<compile_context>
chip_gen: v7x
topology: tpu7x:2x2x1
jax: 0.10.0
libtpu: 0.0.40
codegen_flags: <defaults>
</compile_context>

<pallas_src>
import functools

import jax
import jax.numpy as jnp
from jax import lax
from jax.experimental import pallas as pl
from jax.experimental.pallas import tpu as pltpu


def _round_up(x, m):
    return ((x + m - 1) // m) * m


def _free_decoder_kernel(x_ref, w_ref, out_ref, spill_ref, *,
                         stride, n_seg, t_tile, t_chunk, spill_w, seq_len):
    """One (batch, time-tile) grid step: channel matmul + overlap-add for t_tile frames.

    x_ref:    (C, t_tile)      encoded frames (compute dtype)
    w_ref:    (C, K_pad)       transposed-conv taps, zero-padded to n_seg*stride
    out_ref:  (stride, t_tile) output frames for this tile (f32, lane-dense)
    spill_ref:(stride, spill_w) f32 scratch carrying the overlap spill to the next
              chunk / next tile (grid iterates the tile axis sequentially).
    """
    j = pl.program_id(1)
    H = n_seg - 1                         # frames of overlap spilling forward
    k_pad = n_seg * stride
    num_chunks = t_tile // t_chunk

    w = w_ref[...]                                                   # (C, K_pad), tiny
    col = lax.broadcasted_iota(jnp.int32, (k_pad, t_chunk), 1)       # frame idx in chunk

    if H > 0:
        @pl.when(j == 0)
        def _init_spill():
            spill_ref[...] = jnp.zeros_like(spill_ref)

    def chunk_body(ci, carry_token):
        off = pl.multiple_of(ci * t_chunk, 128)
        # Y[k, t] = sum_c w[c, k] * x[c, t]: contract over the channel (sublane) axis of
        # both operands so the big x tile is consumed in its native layout.
        y = lax.dot_general(
            w, x_ref[:, pl.ds(off, t_chunk)],
            dimension_numbers=(((0,), (0,)), ((), ())),
            preferred_element_type=jnp.float32,
        )
        # Ragged last tile / fully-padded extra tile: frames at or past seq_len come from
        # the (partially) out-of-bounds part of the HBM block -> zero them.
        valid = (j * t_tile + off + col) < seq_len
        y = jnp.where(valid, y, 0.0)

        acc = y[:stride, :]                                           # segment s = 0
        if H > 0:
            # Spill carried in from the previous chunk (or previous tile via the scratch).
            carry = spill_ref[...]                                    # (stride, spill_w)
            if t_chunk > spill_w:
                carry = jnp.concatenate(
                    [carry, jnp.zeros((stride, t_chunk - spill_w), jnp.float32)], axis=1)
            acc = acc + carry

            new_spill = jnp.zeros((stride, spill_w), jnp.float32)
            for s in range(1, n_seg):                                 # n_seg is small/static
                ys = y[s * stride:(s + 1) * stride, :]                # (stride, t_chunk)
                # In-chunk contribution: shift right by s frames, zero-fill on the left.
                acc = acc + jnp.concatenate(
                    [jnp.zeros((stride, s), jnp.float32), ys[:, :t_chunk - s]], axis=1)
                # Right spill: the last s frames land in the next chunk's first s frames.
                wrap = ys[:, t_chunk - s:]
                if spill_w > s:
                    wrap = jnp.concatenate(
                        [wrap, jnp.zeros((stride, spill_w - s), jnp.float32)], axis=1)
                new_spill = new_spill + wrap
            spill_ref[...] = new_spill

        # Single lane-dense store per chunk (stride sublanes x t_chunk lanes).
        out_ref[:, pl.ds(off, t_chunk)] = acc
        return carry_token

    lax.fori_loop(0, num_chunks, chunk_body, 0, unroll=num_chunks <= 8)


def free_decoder(encoded, weight, kernel_size, stride=None, *,
                 cast_to_bf16=True,
                 t_chunk=512,
                 vmem_budget_bytes=24 * 1024 * 1024,
                 t_tile_cap=None):
    """Pallas TPU forward pass of FreeDecoder.

    Args:
      encoded: (B, n_filters, T) encoded features.
      weight:  (n_filters, kernel_size) == torch ConvTranspose1d weight[:, 0, :].
      kernel_size, stride: as in the module (stride defaults to kernel_size // 2).
      cast_to_bf16: stream x/w as bf16 with f32 MXU accumulation and f32 output (default
        fast path, ~2x less HBM read traffic; ~1e-2 relative error vs the f32 module).
        Set False for bit-faithful f32 numerics.
      t_chunk: in-kernel lane chunk width (rounded up to a multiple of 128).
      vmem_budget_bytes: budget for the double-buffered HBM<->VMEM streams; the time tile
        grows to fill it (default is v7x-safe).
      t_tile_cap: optional cap on the time tile (mainly for tests).

    Returns:
      (B, 1, (T-1)*stride + kernel_size) float32 waveform.
    """
    B, C, T = encoded.shape
    K = int(kernel_size)
    stride = int(stride) if stride is not None else K // 2
    assert K >= 1 and stride >= 1 and T >= 1
    n_seg = -(-K // stride)                    # ceil(K / stride)
    K_pad = n_seg * stride
    H = n_seg - 1
    L_out = (T - 1) * stride + K

    compute_dtype = jnp.bfloat16 if cast_to_bf16 else encoded.dtype
    x = encoded.astype(compute_dtype)
    w = weight.astype(compute_dtype)
    w_pad = jnp.zeros((C, K_pad), compute_dtype).at[:, :K].set(w)    # extra taps -> 0

    # ---- tiling: one big lane-dense time tile sized from the VMEM budget ---------------
    spill_w = _round_up(max(H, 1), 128)
    t_chunk = _round_up(max(int(t_chunk), spill_w, 128), 128)
    assert H < t_chunk, "kernel_size/stride ratio too large for the chosen chunk"
    bytes_x = jnp.dtype(compute_dtype).itemsize
    bytes_per_frame = 2 * C * bytes_x + 2 * stride * 4               # double-buffered in+out
    cap = max(t_chunk, (vmem_budget_bytes // bytes_per_frame) // t_chunk * t_chunk)
    if t_tile_cap is not None:
        cap = min(cap, max(t_chunk, _round_up(int(t_tile_cap), t_chunk)))
    t_tile = min(cap, _round_up(T + H, t_chunk))
    num_tiles = -(-(T + H) // t_tile)          # output frame capacity >= T + H
    last_blk = (T - 1) // t_tile               # last x block holding any real frames

    kern = functools.partial(
        _free_decoder_kernel, stride=stride, n_seg=n_seg, t_tile=t_tile,
        t_chunk=t_chunk, spill_w=spill_w, seq_len=T)

    vmem_limit = int(min(vmem_budget_bytes + 16 * 1024 * 1024, 100 * 1024 * 1024))
    cost = pl.CostEstimate(
        flops=2 * B * C * K_pad * T + 2 * B * n_seg * stride * T,
        transcendentals=0,
        bytes_accessed=(B * C * T + C * K_pad) * int(bytes_x)
                       + B * num_tiles * t_tile * stride * 4,
    )

    frames = pl.pallas_call(
        kern,
        out_shape=jax.ShapeDtypeStruct((B, num_tiles, stride, t_tile), jnp.float32),
        grid=(B, num_tiles),
        in_specs=[
            # x: (C, t_tile) block; clamp the block index so the DMA never starts past the
            # real sequence (the kernel masks those frames to zero anyway).
            pl.BlockSpec((None, C, t_tile),
                         lambda b, j: (b, 0, jnp.minimum(j, last_blk))),
            # w: tiny and grid-invariant.
            pl.BlockSpec((C, K_pad), lambda b, j: (0, 0)),
        ],
        out_specs=pl.BlockSpec((None, None, stride, t_tile),
                               lambda b, j: (b, j, 0, 0)),
        scratch_shapes=[pltpu.VMEM((stride, spill_w), jnp.float32)],
        compiler_params=pltpu.CompilerParams(
            dimension_semantics=("parallel", "arbitrary"),
            vmem_limit_bytes=vmem_limit,
        ),
        cost_estimate=cost,
    )(x, w_pad)

    # frames[b, j, r, f] = out[b, (j*t_tile + f)*stride + r].
    # Single fused interleave + trim pass in XLA.
    # TODO(synk): fold this (stride, t) -> (t, stride) interleave into the kernel once a
    # lane-crossing reshape to a (t*stride//128, 128) waveform block lowers reliably.
    wave = jnp.transpose(frames, (0, 1, 3, 2)).reshape(B, num_tiles * t_tile * stride)
    return wave[:, :L_out].reshape(B, 1, L_out)


def _reference_conv_transpose1d(x, w, stride):
    """Dense pure-JAX reference of nn.ConvTranspose1d(C, 1, K, stride, bias=False)."""
    B, C, T = x.shape
    K = w.shape[-1]
    L = (T - 1) * stride + K
    y = jnp.einsum("bct,ck->btk", x.astype(jnp.float32), w.astype(jnp.float32))
    pos = (jnp.arange(T)[:, None] * stride + jnp.arange(K)[None, :]).reshape(-1)
    out = jnp.zeros((B, L), jnp.float32).at[:, pos].add(y.reshape(B, T * K))
    return out.reshape(B, 1, L)


if __name__ == "__main__":
    # Match both reference and kernel f32 matmul precision so the f32 check is tight.
    jax.config.update("jax_default_matmul_precision", "highest")

    # FreeDecoder(kernel_size=16, n_filters=32) -> stride = 8; batch=2, time_frames=8.
    B, C, T = 2, 32, 8
    kernel_size = 16
    stride = kernel_size // 2

    key = jax.random.PRNGKey(0)
    k_x, k_w = jax.random.split(key)
    encoded = jax.random.normal(k_x, (B, C, T), dtype=jnp.float32)
    weight = 0.1 * jax.random.normal(k_w, (C, kernel_size), dtype=jnp.float32)

    expected = _reference_conv_transpose1d(encoded, weight, stride)

    # 1) f32 path: matches the PyTorch module's numerics.
    out_f32 = jax.block_until_ready(
        free_decoder(encoded, weight, kernel_size, stride, cast_to_bf16=False))
    assert out_f32.shape == (B, 1, (T - 1) * stride + kernel_size), out_f32.shape
    assert jnp.allclose(out_f32, expected, atol=1e-3, rtol=1e-3), "f32 mismatch"

    # 2) default fast path: bf16 HBM streams, f32 MXU accumulation.
    out_fast = jax.block_until_ready(free_decoder(encoded, weight, kernel_size, stride))
    assert jnp.allclose(out_fast, expected, atol=5e-2, rtol=5e-2), "bf16 mismatch"

    # 3) multi-tile / multi-chunk / ragged tail + cross-tile spill carry (tiny tiles forced).
    T2 = 300
    enc2 = jax.random.normal(jax.random.PRNGKey(1), (B, C, T2), dtype=jnp.float32)
    exp2 = _reference_conv_transpose1d(enc2, weight, stride)
    out2 = jax.block_until_ready(
        free_decoder(enc2, weight, kernel_size, stride, cast_to_bf16=False,
                     t_chunk=128, t_tile_cap=256))
    assert jnp.allclose(out2, exp2, atol=1e-3, rtol=1e-3), "multi-tile mismatch"

    # 4) T an exact multiple of the tile: the final overlap spill lands in an extra,
    #    fully out-of-range tile (clamped x block index + all frames masked).
    T3 = 256
    enc3 = jax.random.normal(jax.random.PRNGKey(2), (1, C, T3), dtype=jnp.float32)
    exp3 = _reference_conv_transpose1d(enc3, weight, stride)
    out3 = jax.block_until_ready(
        free_decoder(enc3, weight, kernel_size, stride, cast_to_bf16=False,
                     t_chunk=128, t_tile_cap=128))
    assert jnp.allclose(out3, exp3, atol=1e-3, rtol=1e-3), "edge-tile mismatch"

    print("KERNEL_OK")
</pallas_src>

<mosaic_0001>
module attributes {stable_mosaic.version = 11 : i64} {
  func.func @_free_decoder_kernel(%arg0: i32, %arg1: i32, %arg2: memref<1x32x512xf32, #tpu.memory_space<vmem>>, %arg3: memref<32x16xf32, #tpu.memory_space<vmem>>, %arg4: memref<1x1x8x512xf32, #tpu.memory_space<vmem>>, %arg5: memref<8x128xf32, #tpu.memory_space<vmem>>) attributes {dimension_semantics = [#tpu.dimension_semantics<parallel>, #tpu.dimension_semantics<arbitrary>], iteration_bounds = array<i64: 2, 1>, scalar_prefetch = 0 : i64, scratch_operands = 1 : i64, tpu.core_type = #tpu.core_type<tc>, window_params = [{transform_indices = @transform_0, window_bounds = array<i64: 1, 32, 512>}, {pipeline_mode = #tpu.pipeline_mode<synchronous>, transform_indices = @transform_1, window_bounds = array<i64: 32, 16>}, {transform_indices = @transform_2, window_bounds = array<i64: 1, 1, 8, 512>}]} {
    %c0 = arith.constant 0 : index
    %c0_0 = arith.constant 0 : index
    %0 = vector.load %arg3[%c0, %c0_0] : memref<32x16xf32, #tpu.memory_space<vmem>>, vector<32x16xf32>
    %1 = tpu.iota {dimensions = array<i32: 1>} : vector<16x512xi32>
    %c0_i32 = arith.constant 0 : i32
    %2 = arith.cmpi eq, %arg1, %c0_i32 : i32
    %3 = arith.extui %2 : i1 to i32
    %c0_i32_1 = arith.constant 0 : i32
    %4 = arith.cmpi ne, %3, %c0_i32_1 : i32
    scf.if %4 {
      %cst_18 = arith.constant 0.000000e+00 : f32
      %39 = vector.broadcast %cst_18 : f32 to vector<8x128xf32>
      %c0_19 = arith.constant 0 : index
      %c0_20 = arith.constant 0 : index
      %40 = vector.load %arg5[%c0_19, %c0_20] : memref<8x128xf32, #tpu.memory_space<vmem>>, vector<8x128xf32>
      tpu.vector_store %arg5[%c0_19, %c0_20], %39 {strides = array<i32>} : memref<8x128xf32, #tpu.memory_space<vmem>>, vector<8x128xf32>,
    } else {
    }
    %c0_i32_2 = arith.constant 0 : i32
    %c512_i32 = arith.constant 512 : i32
    %5 = arith.muli %c0_i32_2, %c512_i32 : i32
    %6 = tpu.assume_multiple %5, 128 : i32
    %c0_3 = arith.constant 0 : index
    %c0_4 = arith.constant 0 : index
    %7 = arith.index_cast %6 : i32 to index
    %8 = vector.load %arg2[%c0_3, %c0_4, %7] : memref<1x32x512xf32, #tpu.memory_space<vmem>>, vector<1x32x512xf32>
    %9 = vector.shape_cast %8 : vector<1x32x512xf32> to vector<32x512xf32>
    %cst = arith.constant dense<0.000000e+00> : vector<16x512xf32>
    %10 = tpu.matmul %0, %9, %cst {dimension_numbers = #tpu.dot_dimension_numbers<[0], [0], [1], [1], [0, 1, 1, 1], [], []>, precision = #tpu.contract_precision<fp32>} : vector<32x16xf32>, vector<32x512xf32>, vector<16x512xf32> -> vector<16x512xf32>
    %c512_i32_5 = arith.constant 512 : i32
    %11 = arith.muli %arg1, %c512_i32_5 : i32
    %12 = arith.addi %11, %6 : i32
    %13 = vector.broadcast %12 : i32 to vector<16x512xi32>
    %14 = arith.addi %13, %1 : vector<16x512xi32>
    %c8_i32 = arith.constant 8 : i32
    %15 = vector.broadcast %c8_i32 : i32 to vector<16x512xi32>
    %16 = arith.cmpi slt, %14, %15 : vector<16x512xi32>
    %cst_6 = arith.constant 0.000000e+00 : f32
    %17 = vector.broadcast %cst_6 : f32 to vector<16x512xf32>
    %18 = arith.select %16, %10, %17 : vector<16x512xi1>, vector<16x512xf32>
    %19 = vector.extract_strided_slice %18 {offsets = [0, 0], sizes = [8, 512], strides = [1, 1]} : vector<16x512xf32> to vector<8x512xf32>
    %c0_7 = arith.constant 0 : index
    %c0_8 = arith.constant 0 : index
    %20 = vector.load %arg5[%c0_7, %c0_8] : memref<8x128xf32, #tpu.memory_space<vmem>>, vector<8x128xf32>
    %cst_9 = arith.constant 0.000000e+00 : f32
    %21 = vector.broadcast %cst_9 : f32 to vector<8x384xf32>
    %22 = tpu.concatenate %20, %21 in 1 : vector<8x128xf32>, vector<8x384xf32> -> vector<8x512xf32>
    %23 = arith.addf %19, %22 : vector<8x512xf32>
    %cst_10 = arith.constant 0.000000e+00 : f32
    %24 = vector.broadcast %cst_10 : f32 to vector<8x128xf32>
    %25 = vector.extract_strided_slice %18 {offsets = [8, 0], sizes = [8, 512], strides = [1, 1]} : vector<16x512xf32> to vector<8x512xf32>
    %cst_11 = arith.constant 0.000000e+00 : f32
    %26 = vector.broadcast %cst_11 : f32 to vector<8x1xf32>
    %27 = vector.extract_strided_slice %25 {offsets = [0, 0], sizes = [8, 511], strides = [1, 1]} : vector<8x512xf32> to vector<8x511xf32>
    %28 = tpu.concatenate %26, %27 in 1 : vector<8x1xf32>, vector<8x511xf32> -> vector<8x512xf32>
    %29 = arith.addf %23, %28 : vector<8x512xf32>
    %30 = vector.extract_strided_slice %25 {offsets = [0, 511], sizes = [8, 1], strides = [1, 1]} : vector<8x512xf32> to vector<8x1xf32>
    %cst_12 = arith.constant 0.000000e+00 : f32
    %31 = vector.broadcast %cst_12 : f32 to vector<8x127xf32>
    %32 = tpu.concatenate %30, %31 in 1 : vector<8x1xf32>, vector<8x127xf32> -> vector<8x128xf32>
    %33 = arith.addf %24, %32 : vector<8x128xf32>
    %c0_13 = arith.constant 0 : index
    %c0_14 = arith.constant 0 : index
    %34 = vector.load %arg5[%c0_13, %c0_14] : memref<8x128xf32, #tpu.memory_space<vmem>>, vector<8x128xf32>
    tpu.vector_store %arg5[%c0_13, %c0_14], %33 {strides = array<i32>} : memref<8x128xf32, #tpu.memory_space<vmem>>, vector<8x128xf32>,
    %c0_15 = arith.constant 0 : index
    %c0_16 = arith.constant 0 : index
    %c0_17 = arith.constant 0 : index
    %35 = arith.index_cast %6 : i32 to index
    %36 = vector.load %arg4[%c0_15, %c0_16, %c0_17, %35] : memref<1x1x8x512xf32, #tpu.memory_space<vmem>>, vector<1x1x8x512xf32>
    %37 = vector.shape_cast %36 : vector<1x1x8x512xf32> to vector<8x512xf32>
    %38 = vector.shape_cast %29 : vector<8x512xf32> to vector<1x1x8x512xf32>
    tpu.vector_store %arg4[%c0_15, %c0_16, %c0_17, %35], %38 {strides = array<i32>} : memref<1x1x8x512xf32, #tpu.memory_space<vmem>>, vector<1x1x8x512xf32>,
    %c1_i32 = arith.constant 1 : i32
    return
  }
  func.func @transform_0(%arg0: i32, %arg1: i32) -> (i32, i32, i32) {
    %c0_i32 = arith.constant 0 : i32
    %0 = arith.minsi %arg1, %c0_i32 : i32
    %c0_i32_0 = arith.constant 0 : i32
    %c0_i32_1 = arith.constant 0 : i32
    return %arg0, %c0_i32_0, %0 : i32, i32, i32
  }
  func.func @transform_1(%arg0: i32, %arg1: i32) -> (i32, i32) {
    %c0_i32 = arith.constant 0 : i32
    %c0_i32_0 = arith.constant 0 : i32
    %c0_i32_1 = arith.constant 0 : i32
    return %c0_i32, %c0_i32_0 : i32, i32
  }
  func.func @transform_2(%arg0: i32, %arg1: i32) -> (i32, i32, i32, i32) {
    %c0_i32 = arith.constant 0 : i32
    %c0_i32_0 = arith.constant 0 : i32
    %c0_i32_1 = arith.constant 0 : i32
    return %arg0, %arg1, %c0_i32, %c0_i32_0 : i32, i32, i32, i32
  }
}

</mosaic_0001>

<llo_original>
// kernel: tpu_custom_call.1
$region0: #{tpu_custom_call.1}
  #allocation0 [shape = 'u32[]', space=smem, size = 0x4, offset = 0x4, fixed_abs, tag = 'smem constant byte address 0x4 - core index']
  #allocation1 [shape = 'u32[144,128]{1,0:T(1,128)}', space=vmem, size = 0x12000, scoped, tag = 'internal scratch']
  #allocation2 [shape = 'f32[8,128]{1,0:T(8,128)}', space=vmem, size = 0x1000, scoped, tag = 'scratch operand']
  %s0 = inlined_call_operand.vmem [shape: f32[2,32,8], index: 0, kind: input, shape index: {}]
  %s1 = inlined_call_operand.vmem [shape: f32[32,16], index: 1, kind: input, shape index: {}]
  %s2 = inlined_call_operand.hbm [shape: f32[2,1,8,512], index: 2, kind: output, shape index: {}]
  %s3 = sld [smem:[#allocation0]]
  $region111: #{tpu_custom_call.1} parent=0
    _
  %s5 = ssub.s32 1, %s3
  %s6 = scalar_select 0, %s5, %s3
  $region1: #{tpu_custom_call.1} parent=0
    #allocation3 [shape = 'u8[131072]{0}', space=vmem, size = 0x20000, scoped, tag = 'input window, operand 0']
    #allocation4 [shape = 'u8[32768]{0}', space=vmem, size = 0x8000, scoped, tag = 'output window, operand 0']
    #allocation5 [shape = 's32[2]{0}', space=sflag, size = 0x8, scoped, tag = 'scoped memory for tpu_custom_call.1']
    %7 = vsyncpa [#allocation5], 0
    %s8 = scalar_lea.sflag [#allocation5], 1
    %9 = vsyncpa %s8, 0
    loop: start=0, step=1, limit=4
    $region2: #{tpu_custom_call.1} parent=1 // loop_pre_header
      _
    $region3: #{tpu_custom_call.1} parent=1 // loop_header
      %s11 = sphi 0, %s15
      %p12 = scmp.ge.s32.totalorder %s11, 4
      %s18 = sphi 0, %s30
      %s19 = sphi 0, %s26
      %s20 = sphi 0, %s18
      %s21 = sphi 0, %s19
      %s22 = sphi 0, %s20
      %s23 = sphi 0, %s21
      %s39 = sphi 0, %s41
      %s42 = sphi 0, %s39
      %s43 = sphi 0, %s42
      %s59 = sphi 0, %s43
      %s63 = sphi 0, %s63
      %s65 = sphi 0, %s63
      %s66 = sphi 0, %s65
      %s80 = sphi 0, %s66
      %s88 = sphi 0, %s90
      %s91 = sphi 0, %s88
      %s92 = sphi 0, %s91
      %s108 = sphi 0, %s92
    $region4: #{tpu_custom_call.1} parent=1 // loop_header_branch
      %14 = sbr.rel (%p12) target = $region8
    $region5: #{tpu_custom_call.1} parent=1 // loop_body
      %s16 = ssub.s32 %s11, 1
      %s17 = ssub.s32 %s11, 2
      %s24 = sadd.s32 1, %s19
      %p25 = scmp.ge.s32.totalorder %s24, 1
      %s26 = scalar_select %p25, 0, %s24
      %s27 = sadd.s32 1, %s18
      %s28 = scalar_select %p25, %s27, %s18
      %p29 = scmp.ge.s32.totalorder %s28, 2
      %s30 = scalar_select %p29, 0, %s28
      %p31 = scmp.lt.s32.totalorder %s19, 0
      %s32 = scalar_select %p31, %s19, 0
      %p33 = scmp.lt.s32.totalorder %s26, 0
      %s34 = scalar_select %p33, %s26, 0
      %s35 = ssub.s32 %s18, %s30
      %s36 = ssub.s32 %s32, %s34
      %s37 = sor.u32 %s35, %s36
      %p38 = scmp.eq.s32.totalorder %s37, 0
      %s40 = sadd.s32 %s39, 1
      %s41 = scalar_select %p38, %s39, %s40
      %p44 = pneg %p38
      %p45 = scmp.eq.s32.totalorder %s11, 1
      %p46 = por %p44, %p45
      %p47 = scmp.ne.s32.totalorder %s39, %s42
      %p48 = scmp.eq.s32.totalorder %s11, 0
      %p49 = por %p47, %p48
      %p50 = scmp.ne.s32.totalorder %s39, %s42
      %p51 = scmp.eq.s32.totalorder %s16, 1
      %p52 = por %p50, %p51
      %p53 = scmp.ne.s32.totalorder %s42, %s43
      %p54 = scmp.eq.s32.totalorder %s16, 0
      %p55 = por %p53, %p54
      %p56 = scmp.ne.s32.totalorder %s42, %s43
      %p57 = scmp.eq.s32.totalorder %s17, 1
      %p58 = por %p56, %p57
      %p60 = scmp.ne.s32.totalorder %s43, %s59
      %p61 = scmp.eq.s32.totalorder %s17, 0
      %p62 = por %p60, %p61
      %s64 = sadd.s32 %s63, 1
      %p67 = scmp.eq.s32.totalorder %s11, 1
      %p68 = scmp.ne.s32.totalorder %s63, %s65
      %p69 = scmp.eq.s32.totalorder %s11, 0
      %p70 = por %p68, %p69
      %p71 = scmp.ne.s32.totalorder %s63, %s65
      %p72 = scmp.eq.s32.totalorder %s16, 1
      %p73 = por %p71, %p72
      %p74 = scmp.ne.s32.totalorder %s65, %s66
      %p75 = scmp.eq.s32.totalorder %s16, 0
      %p76 = por %p74, %p75
      %p77 = scmp.ne.s32.totalorder %s65, %s66
      %p78 = scmp.eq.s32.totalorder %s17, 1
      %p79 = por %p77, %p78
      %p81 = scmp.ne.s32.totalorder %s66, %s80
      %p82 = scmp.eq.s32.totalorder %s17, 0
      %p83 = por %p81, %p82
      %s84 = ssub.s32 %s18, %s30
      %s85 = ssub.s32 %s19, %s26
      %s86 = sor.u32 %s84, %s85
      %p87 = scmp.eq.s32.totalorder %s86, 0
      %s89 = sadd.s32 %s88, 1
      %s90 = scalar_select %p87, %s88, %s89
      %p93 = pneg %p87
      %p94 = scmp.eq.s32.totalorder %s11, 1
      %p95 = por %p93, %p94
      %p96 = scmp.ne.s32.totalorder %s88, %s91
      %p97 = scmp.eq.s32.totalorder %s11, 0
      %p98 = por %p96, %p97
      %p99 = scmp.ne.s32.totalorder %s88, %s91
      %p100 = scmp.eq.s32.totalorder %s16, 1
      %p101 = por %p99, %p100
      %p102 = scmp.ne.s32.totalorder %s91, %s92
      %p103 = scmp.eq.s32.totalorder %s16, 0
      %p104 = por %p102, %p103
      %p105 = scmp.ne.s32.totalorder %s91, %s92
      %p106 = scmp.eq.s32.totalorder %s17, 1
      %p107 = por %p105, %p106
      %p109 = scmp.ne.s32.totalorder %s92, %s108
      %p110 = scmp.eq.s32.totalorder %s17, 0
      %p111 = por %p109, %p110
      %p112 = scmp.le.s32.totalorder 1, %s11
      %p113 = scmp.lt.s32.totalorder %s11, 3
      %p114 = pnand %p112, %p113
      %p115 = pneg %p114
      // Predicated region
      $region9: #{tpu_custom_call.1} parent=5 // pred_check
        _
      $region10: #{tpu_custom_call.1} parent=5 // pred_check_branch
        %117 = sbr.rel (%p114) target = $region12
      $region11: #{tpu_custom_call.1} parent=5 // pred_region
        %s118 = ssub.s32 %s11, 1
        // Predicated region
        $region13: #{tpu_custom_call.1} parent=11 // pred_check
          %p119 = pneg %p76
        $region14: #{tpu_custom_call.1} parent=11 // pred_check_branch
          %121 = sbr.rel (%p119) target = $region16
        $region15: #{tpu_custom_call.1} parent=11 // pred_region
          _
        $region16: #{tpu_custom_call.1} parent=11 // pred_fallthru
          _
      $region12: #{tpu_custom_call.1} parent=5 // pred_fallthru
        _
      %p122 = scmp.lt.s32.totalorder %s11, 2
      // Predicated region
      $region17: #{tpu_custom_call.1} parent=5 // pred_check
        %p123 = pneg %p122
      $region18: #{tpu_custom_call.1} parent=5 // pred_check_branch
        %125 = sbr.rel (%p123) target = $region20
      $region19: #{tpu_custom_call.1} parent=5 // pred_region
        // Predicated region
        $region21: #{tpu_custom_call.1} parent=19 // pred_check
          %p126 = pneg %p49
        $region22: #{tpu_custom_call.1} parent=19 // pred_check_branch
          %128 = sbr.rel (%p126) target = $region24
        $region23: #{tpu_custom_call.1} parent=19 // pred_region
          %s129 = sand.u32 %s39, 1
          %s130 = sand.u32 %s39, 1
          %s131 = smul.addr %s130, 128
          %s132 = scalar_lea.vmem [#allocation3], %s131
          %p133 = scmp.lt.s32.totalorder %s19, 0
          %s134 = scalar_select %p133, %s19, 0
          %s135 = smul.u32 4, %s134
          %s136 = ssub.s32 1, %s135
          %s137 = smul.u32 512, %s136
          %p138 = scmp.ne.s32.totalorder 0, %s137
          %s139 = smul.addr %s18, 4
          %s140 = sadd.s32 %s135, %s139
          %s141 = smul.addr %s140, 8
          %s142 = scalar_lea.vmem %s0, %s141
          %s143 = smul.u32 %s136, 8
          // Predicated region
          $region25: #{tpu_custom_call.1} parent=23 // pred_check
            %p144 = pneg %p138
          $region26: #{tpu_custom_call.1} parent=23 // pred_check_branch
            %146 = sbr.rel (%p144) target = $region28
          $region27: #{tpu_custom_call.1} parent=23 // pred_region
            %p147 = scmp.lt.u32.totalorder %s143, 8
            %p148 = pneg %p147
            // Predicated region
            $region29: #{tpu_custom_call.1} parent=27 // pred_check
              _
            $region30: #{tpu_custom_call.1} parent=27 // pred_check_branch
              %150 = sbr.rel (%p147) target = $region32
            $region31: #{tpu_custom_call.1} parent=27 // pred_region
              %s171 = sand.u32 %s143, 7
              %p172 = scmp.eq.s32.totalorder %s171, 0
              // Predicated region
              $region44: #{tpu_custom_call.1} parent=31 // pred_check
                %p173 = pneg %p172
              $region45: #{tpu_custom_call.1} parent=31 // pred_check_branch
                %175 = sbr.rel (%p173) target = $region47
              $region46: #{tpu_custom_call.1} parent=31 // pred_region
                %s176 = sshrl.u32 %s143, 3
                %s177 = sshrl.u32 %s176, 4
                // While loop
                $region48: #{tpu_custom_call.1} parent=46 // loop_pre_header
                  _
                $region49: #{tpu_custom_call.1} parent=46 // loop_header
                  %s181 = sphi 0, %s183
                  %p182 = scmp.ge.s32.totalorder %s181, %s177
                  %s186 = sphi 0, %s319
                  %s187 = sphi %s142, %s322
                  %s188 = sphi %s132, %s323
                $region50: #{tpu_custom_call.1} parent=46 // loop_header_branch
                  %185 = sbr.rel (%p182) target = $region54
                $region51: #{tpu_custom_call.1} parent=46 // loop_body
                  %v189 = vld [vmem:[%s187] sm:$0xff]
                  %190 = vst [vmem:[%s188] sm:$0xff] %v189
                  %v191 = vld [vmem:[%s187 + $0x8] sm:$0xff]
                  %192 = vst [vmem:[%s188 + $0x8] sm:$0xff] %v191
                  %v193 = vld [vmem:[%s187 + $0x10] sm:$0xff]
                  %194 = vst [vmem:[%s188 + $0x10] sm:$0xff] %v193
                  %v195 = vld [vmem:[%s187 + $0x18] sm:$0xff]
                  %196 = vst [vmem:[%s188 + $0x18] sm:$0xff] %v195
                  %v197 = vld [vmem:[%s187 + $0x20] sm:$0xff]
                  %198 = vst [vmem:[%s188 + $0x20] sm:$0xff] %v197
                  %v199 = vld [vmem:[%s187 + $0x28] sm:$0xff]
                  %200 = vst [vmem:[%s188 + $0x28] sm:$0xff] %v199
                  %v201 = vld [vmem:[%s187 + $0x30] sm:$0xff]
                  %202 = vst [vmem:[%s188 + $0x30] sm:$0xff] %v201
                  %v203 = vld [vmem:[%s187 + $0x38] sm:$0xff]
                  %204 = vst [vmem:[%s188 + $0x38] sm:$0xff] %v203
                  %v205 = vld [vmem:[%s187 + $0x40] sm:$0xff]
                  %206 = vst [vmem:[%s188 + $0x40] sm:$0xff] %v205
                  %v207 = vld [vmem:[%s187 + $0x48] sm:$0xff]
                  %208 = vst [vmem:[%s188 + $0x48] sm:$0xff] %v207
                  %v209 = vld [vmem:[%s187 + $0x50] sm:$0xff]
                  %210 = vst [vmem:[%s188 + $0x50] sm:$0xff] %v209
                  %v211 = vld [vmem:[%s187 + $0x58] sm:$0xff]
                  %212 = vst [vmem:[%s188 + $0x58] sm:$0xff] %v211
                  %v213 = vld [vmem:[%s187 + $0x60] sm:$0xff]
                  %214 = vst [vmem:[%s188 + $0x60] sm:$0xff] %v213
                  %v215 = vld [vmem:[%s187 + $0x68] sm:$0xff]
                  %216 = vst [vmem:[%s188 + $0x68] sm:$0xff] %v215
                  %v217 = vld [vmem:[%s187 + $0x70] sm:$0xff]
                  %218 = vst [vmem:[%s188 + $0x70] sm:$0xff] %v217
                  %v219 = vld [vmem:[%s187 + $0x78] sm:$0xff]
                  %220 = vst [vmem:[%s188 + $0x78] sm:$0xff] %v219
                  %v221 = vld [vmem:[%s187 + $0x8] sm:$0xff]
                  %222 = vst [vmem:[%s188 + $0x20] sm:$0xff] %v221
                  %v223 = vld [vmem:[%s187 + $0x10] sm:$0xff]
                  %224 = vst [vmem:[%s188 + $0x28] sm:$0xff] %v223
                  %v225 = vld [vmem:[%s187 + $0x18] sm:$0xff]
                  %226 = vst [vmem:[%s188 + $0x30] sm:$0xff] %v225
                  %v227 = vld [vmem:[%s187 + $0x20] sm:$0xff]
                  %228 = vst [vmem:[%s188 + $0x38] sm:$0xff] %v227
                  %v229 = vld [vmem:[%s187 + $0x28] sm:$0xff]
                  %230 = vst [vmem:[%s188 + $0x40] sm:$0xff] %v229
                  %v231 = vld [vmem:[%s187 + $0x30] sm:$0xff]
                  %232 = vst [vmem:[%s188 + $0x48] sm:$0xff] %v231
                  %v233 = vld [vmem:[%s187 + $0x38] sm:$0xff]
                  %234 = vst [vmem:[%s188 + $0x50] sm:$0xff] %v233
                  %v235 = vld [vmem:[%s187 + $0x40] sm:$0xff]
                  %236 = vst [vmem:[%s188 + $0x58] sm:$0xff] %v235
                  %v237 = vld [vmem:[%s187 + $0x48] sm:$0xff]
                  %238 = vst [vmem:[%s188 + $0x60] sm:$0xff] %v237
                  %v239 = vld [vmem:[%s187 + $0x50] sm:$0xff]
                  %240 = vst [vmem:[%s188 + $0x68] sm:$0xff] %v239
                  %v241 = vld [vmem:[%s187 + $0x58] sm:$0xff]
                  %242 = vst [vmem:[%s188 + $0x70] sm:$0xff] %v241
                  %v243 = vld [vmem:[%s187 + $0x60] sm:$0xff]
                  %244 = vst [vmem:[%s188 + $0x78] sm:$0xff] %v243
                  %v245 = vld [vmem:[%s187 + $0x68] sm:$0xff]
                  %246 = vst [vmem:[%s188 + $0x80] sm:$0xff] %v245
                  %v247 = vld [vmem:[%s187 + $0x70] sm:$0xff]
                  %248 = vst [vmem:[%s188 + $0x88] sm:$0xff] %v247
                  %v249 = vld [vmem:[%s187 + $0x78] sm:$0xff]
                  %250 = vst [vmem:[%s188 + $0x90] sm:$0xff] %v249
                  %v251 = vld [vmem:[%s187 + $0x80] sm:$0xff]
                  %252 = vst [vmem:[%s188 + $0x98] sm:$0xff] %v251
                  %v253 = vld [vmem:[%s187 + $0x10] sm:$0xff]
                  %254 = vst [vmem:[%s188 + $0x40] sm:$0xff] %v253
                  %v255 = vld [vmem:[%s187 + $0x18] sm:$0xff]
                  %256 = vst [vmem:[%s188 + $0x48] sm:$0xff] %v255
                  %v257 = vld [vmem:[%s187 + $0x20] sm:$0xff]
                  %258 = vst [vmem:[%s188 + $0x50] sm:$0xff] %v257
                  %v259 = vld [vmem:[%s187 + $0x28] sm:$0xff]
                  %260 = vst [vmem:[%s188 + $0x58] sm:$0xff] %v259
                  %v261 = vld [vmem:[%s187 + $0x30] sm:$0xff]
                  %262 = vst [vmem:[%s188 + $0x60] sm:$0xff] %v261
                  %v263 = vld [vmem:[%s187 + $0x38] sm:$0xff]
                  %264 = vst [vmem:[%s188 + $0x68] sm:$0xff] %v263
                  %v265 = vld [vmem:[%s187 + $0x40] sm:$0xff]
                  %266 = vst [vmem:[%s188 + $0x70] sm:$0xff] %v265
                  %v267 = vld [vmem:[%s187 + $0x48] sm:$0xff]
                  %268 = vst [vmem:[%s188 + $0x78] sm:$0xff] %v267
                  %v269 = vld [vmem:[%s187 + $0x50] sm:$0xff]
                  %270 = vst [vmem:[%s188 + $0x80] sm:$0xff] %v269
                  %v271 = vld [vmem:[%s187 + $0x58] sm:$0xff]
                  %272 = vst [vmem:[%s188 + $0x88] sm:$0xff] %v271
                  %v273 = vld [vmem:[%s187 + $0x60] sm:$0xff]
                  %274 = vst [vmem:[%s188 + $0x90] sm:$0xff] %v273
                  %v275 = vld [vmem:[%s187 + $0x68] sm:$0xff]
                  %276 = vst [vmem:[%s188 + $0x98] sm:$0xff] %v275
                  %v277 = vld [vmem:[%s187 + $0x70] sm:$0xff]
                  %278 = vst [vmem:[%s188 + $0xa0] sm:$0xff] %v277
                  %v279 = vld [vmem:[%s187 + $0x78] sm:$0xff]
                  %280 = vst [vmem:[%s188 + $0xa8] sm:$0xff] %v279
                  %v281 = vld [vmem:[%s187 + $0x80] sm:$0xff]
                  %282 = vst [vmem:[%s188 + $0xb0] sm:$0xff] %v281
                  %v283 = vld [vmem:[%s187 + $0x88] sm:$0xff]
                  %284 = vst [vmem:[%s188 + $0xb8] sm:$0xff] %v283
                  %v285 = vld [vmem:[%s187 + $0x18] sm:$0xff]
                  %286 = vst [vmem:[%s188 + $0x60] sm:$0xff] %v285
                  %v287 = vld [vmem:[%s187 + $0x20] sm:$0xff]
                  %288 = vst [vmem:[%s188 + $0x68] sm:$0xff] %v287
                  %v289 = vld [vmem:[%s187 + $0x28] sm:$0xff]
                  %290 = vst [vmem:[%s188 + $0x70] sm:$0xff] %v289
                  %v291 = vld [vmem:[%s187 + $0x30] sm:$0xff]
                  %292 = vst [vmem:[%s188 + $0x78] sm:$0xff] %v291
                  %v293 = vld [vmem:[%s187 + $0x38] sm:$0xff]
                  %294 = vst [vmem:[%s188 + $0x80] sm:$0xff] %v293
                  %v295 = vld [vmem:[%s187 + $0x40] sm:$0xff]
                  %296 = vst [vmem:[%s188 + $0x88] sm:$0xff] %v295
                  %v297 = vld [vmem:[%s187 + $0x48] sm:$0xff]
                  %298 = vst [vmem:[%s188 + $0x90] sm:$0xff] %v297
                  %v299 = vld [vmem:[%s187 + $0x50] sm:$0xff]
                  %300 = vst [vmem:[%s188 + $0x98] sm:$0xff] %v299
                  %v301 = vld [vmem:[%s187 + $0x58] sm:$0xff]
                  %302 = vst [vmem:[%s188 + $0xa0] sm:$0xff] %v301
                  %v303 = vld [vmem:[%s187 + $0x60] sm:$0xff]
                  %304 = vst [vmem:[%s188 + $0xa8] sm:$0xff] %v303
                  %v305 = vld [vmem:[%s187 + $0x68] sm:$0xff]
                  %306 = vst [vmem:[%s188 + $0xb0] sm:$0xff] %v305
                  %v307 = vld [vmem:[%s187 + $0x70] sm:$0xff]
                  %308 = vst [vmem:[%s188 + $0xb8] sm:$0xff] %v307
                  %v309 = vld [vmem:[%s187 + $0x78] sm:$0xff]
                  %310 = vst [vmem:[%s188 + $0xc0] sm:$0xff] %v309
                  %v311 = vld [vmem:[%s187 + $0x80] sm:$0xff]
                  %312 = vst [vmem:[%s188 + $0xc8] sm:$0xff] %v311
                  %v313 = vld [vmem:[%s187 + $0x88] sm:$0xff]
                  %314 = vst [vmem:[%s188 + $0xd0] sm:$0xff] %v313
                  %v315 = vld [vmem:[%s187 + $0x90] sm:$0xff]
                  %316 = vst [vmem:[%s188 + $0xd8] sm:$0xff] %v315
                  %s317 = sadd.s32 1, %s186
                  %p318 = scmp.ge.s32.totalorder %s317, %s177
                  %s319 = scalar_select %p318, 0, %s317
                  %s320 = smul.u32 %s319, 128
                  %s321 = smul.u32 %s319, 128
                  %s322 = scalar_lea.vmem %s142, %s320
                  %s323 = scalar_lea.vmem %s132, %s321 [#allocation3]
                $region52: #{tpu_custom_call.1} parent=46 // loop_footer
                  %s183 = sadd.s32 %s181, 1
                $region53: #{tpu_custom_call.1} parent=46 // loop_footer_branch
                  %180 = sbr.rel target = $region49
                $region54: #{tpu_custom_call.1} parent=46 // loop_exit
                  _
                %s324 = sshrl.u32 %s176, 4
                %s325 = sand.u32 %s176, 15
                %s326 = smul.u32 %s324, 16
                %s327 = smul.u32 128, %s326
                %s328 = sshra.s32 %s327, 4
                %s329 = scalar_lea.vmem %s142, %s328
                %s330 = smul.u32 128, %s326
                %s331 = sshra.s32 %s330, 4
                %s332 = scalar_lea.vmem %s132, %s331 [#allocation3]
                // While loop
                $region55: #{tpu_custom_call.1} parent=46 // loop_pre_header
                  _
                $region56: #{tpu_custom_call.1} parent=46 // loop_header
                  %s336 = sphi 0, %s338
                  %p337 = scmp.ge.s32.totalorder %s336, %s325
                  %s341 = sphi 0, %s354
                  %s342 = sphi %s329, %s357
                  %s343 = sphi %s332, %s358
                $region57: #{tpu_custom_call.1} parent=46 // loop_header_branch
                  %340 = sbr.rel (%p337) target = $region61
                $region58: #{tpu_custom_call.1} parent=46 // loop_body
                  %v344 = vld [vmem:[%s342] sm:$0xff]
                  %345 = vst [vmem:[%s343] sm:$0xff] %v344
                  %v346 = vld [vmem:[%s342 + $0x8] sm:$0xff]
                  %347 = vst [vmem:[%s343 + $0x20] sm:$0xff] %v346
                  %v348 = vld [vmem:[%s342 + $0x10] sm:$0xff]
                  %349 = vst [vmem:[%s343 + $0x40] sm:$0xff] %v348
                  %v350 = vld [vmem:[%s342 + $0x18] sm:$0xff]
                  %351 = vst [vmem:[%s343 + $0x60] sm:$0xff] %v350
                  %s352 = sadd.s32 1, %s341
                  %p353 = scmp.ge.s32.totalorder %s352, %s325
                  %s354 = scalar_select %p353, 0, %s352
                  %s355 = smul.u32 %s354, 8
                  %s356 = smul.u32 %s354, 8
                  %s357 = scalar_lea.vmem %s329, %s355
                  %s358 = scalar_lea.vmem %s332, %s356 [#allocation3]
                $region59: #{tpu_custom_call.1} parent=46 // loop_footer
                  %s338 = sadd.s32 %s336, 1
                $region60: #{tpu_custom_call.1} parent=46 // loop_footer_branch
                  %335 = sbr.rel target = $region56
                $region61: #{tpu_custom_call.1} parent=46 // loop_exit
                  _
              $region47: #{tpu_custom_call.1} parent=31 // pred_fallthru
                _
              %p359 = pneg %p172
              // Predicated region
              $region62: #{tpu_custom_call.1} parent=31 // pred_check
                _
              $region63: #{tpu_custom_call.1} parent=31 // pred_check_branch
                %361 = sbr.rel (%p172) target = $region65
              $region64: #{tpu_custom_call.1} parent=31 // pred_region
                %s362 = sand.u32 %s143, 7
                %s363 = ssub.s32 %s143, %s362
                %s364 = scalar_lea.vmem %s142, %s363
                %s365 = ssub.s32 %s143, %s362
                %s366 = scalar_lea.vmem %s132, %s365 [#allocation3]
                %s367 = sshrl.u32 %s143, 3
                %s368 = sshrl.u32 %s367, 4
                // While loop
                $region66: #{tpu_custom_call.1} parent=64 // loop_pre_header
                  _
                $region67: #{tpu_custom_call.1} parent=64 // loop_header
                  %s372 = sphi 0, %s374
                  %p373 = scmp.ge.s32.totalorder %s372, %s368
                  %s377 = sphi 0, %s510
                  %s378 = sphi %s142, %s513
                  %s379 = sphi %s132, %s514
                $region68: #{tpu_custom_call.1} parent=64 // loop_header_branch
                  %376 = sbr.rel (%p373) target = $region72
                $region69: #{tpu_custom_call.1} parent=64 // loop_body
                  %v380 = vld [vmem:[%s378] sm:$0xff]
                  %381 = vst [vmem:[%s379] sm:$0xff] %v380
                  %v382 = vld [vmem:[%s378 + $0x8] sm:$0xff]
                  %383 = vst [vmem:[%s379 + $0x8] sm:$0xff] %v382
                  %v384 = vld [vmem:[%s378 + $0x10] sm:$0xff]
                  %385 = vst [vmem:[%s379 + $0x10] sm:$0xff] %v384
                  %v386 = vld [vmem:[%s378 + $0x18] sm:$0xff]
                  %387 = vst [vmem:[%s379 + $0x18] sm:$0xff] %v386
                  %v388 = vld [vmem:[%s378 + $0x20] sm:$0xff]
                  %389 = vst [vmem:[%s379 + $0x20] sm:$0xff] %v388
                  %v390 = vld [vmem:[%s378 + $0x28] sm:$0xff]
                  %391 = vst [vmem:[%s379 + $0x28] sm:$0xff] %v390
                  %v392 = vld [vmem:[%s378 + $0x30] sm:$0xff]
                  %393 = vst [vmem:[%s379 + $0x30] sm:$0xff] %v392
                  %v394 = vld [vmem:[%s378 + $0x38] sm:$0xff]
                  %395 = vst [vmem:[%s379 + $0x38] sm:$0xff] %v394
                  %v396 = vld [vmem:[%s378 + $0x40] sm:$0xff]
                  %397 = vst [vmem:[%s379 + $0x40] sm:$0xff] %v396
                  %v398 = vld [vmem:[%s378 + $0x48] sm:$0xff]
                  %399 = vst [vmem:[%s379 + $0x48] sm:$0xff] %v398
                  %v400 = vld [vmem:[%s378 + $0x50] sm:$0xff]
                  %401 = vst [vmem:[%s379 + $0x50] sm:$0xff] %v400
                  %v402 = vld [vmem:[%s378 + $0x58] sm:$0xff]
                  %403 = vst [vmem:[%s379 + $0x58] sm:$0xff] %v402
                  %v404 = vld [vmem:[%s378 + $0x60] sm:$0xff]
                  %405 = vst [vmem:[%s379 + $0x60] sm:$0xff] %v404
                  %v406 = vld [vmem:[%s378 + $0x68] sm:$0xff]
                  %407 = vst [vmem:[%s379 + $0x68] sm:$0xff] %v406
                  %v408 = vld [vmem:[%s378 + $0x70] sm:$0xff]
                  %409 = vst [vmem:[%s379 + $0x70] sm:$0xff] %v408
                  %v410 = vld [vmem:[%s378 + $0x78] sm:$0xff]
                  %411 = vst [vmem:[%s379 + $0x78] sm:$0xff] %v410
                  %v412 = vld [vmem:[%s378 + $0x8] sm:$0xff]
                  %413 = vst [vmem:[%s379 + $0x20] sm:$0xff] %v412
                  %v414 = vld [vmem:[%s378 + $0x10] sm:$0xff]
                  %415 = vst [vmem:[%s379 + $0x28] sm:$0xff] %v414
                  %v416 = vld [vmem:[%s378 + $0x18] sm:$0xff]
                  %417 = vst [vmem:[%s379 + $0x30] sm:$0xff] %v416
                  %v418 = vld [vmem:[%s378 + $0x20] sm:$0xff]
                  %419 = vst [vmem:[%s379 + $0x38] sm:$0xff] %v418
                  %v420 = vld [vmem:[%s378 + $0x28] sm:$0xff]
                  %421 = vst [vmem:[%s379 + $0x40] sm:$0xff] %v420
                  %v422 = vld [vmem:[%s378 + $0x30] sm:$0xff]
                  %423 = vst [vmem:[%s379 + $0x48] sm:$0xff] %v422
                  %v424 = vld [vmem:[%s378 + $0x38] sm:$0xff]
                  %425 = vst [vmem:[%s379 + $0x50] sm:$0xff] %v424
                  %v426 = vld [vmem:[%s378 + $0x40] sm:$0xff]
                  %427 = vst [vmem:[%s379 + $0x58] sm:$0xff] %v426
                  %v428 = vld [vmem:[%s378 + $0x48] sm:$0xff]
                  %429 = vst [vmem:[%s379 + $0x60] sm:$0xff] %v428
                  %v430 = vld [vmem:[%s378 + $0x50] sm:$0xff]
                  %431 = vst [vmem:[%s379 + $0x68] sm:$0xff] %v430
                  %v432 = vld [vmem:[%s378 + $0x58] sm:$0xff]
                  %433 = vst [vmem:[%s379 + $0x70] sm:$0xff] %v432
                  %v434 = vld [vmem:[%s378 + $0x60] sm:$0xff]
                  %435 = vst [vmem:[%s379 + $0x78] sm:$0xff] %v434
                  %v436 = vld [vmem:[%s378 + $0x68] sm:$0xff]
                  %437 = vst [vmem:[%s379 + $0x80] sm:$0xff] %v436
                  %v438 = vld [vmem:[%s378 + $0x70] sm:$0xff]
                  %439 = vst [vmem:[%s379 + $0x88] sm:$0xff] %v438
                  %v440 = vld [vmem:[%s378 + $0x78] sm:$0xff]
                  %441 = vst [vmem:[%s379 + $0x90] sm:$0xff] %v440
                  %v442 = vld [vmem:[%s378 + $0x80] sm:$0xff]
                  %443 = vst [vmem:[%s379 + $0x98] sm:$0xff] %v442
                  %v444 = vld [vmem:[%s378 + $0x10] sm:$0xff]
                  %445 = vst [vmem:[%s379 + $0x40] sm:$0xff] %v444
                  %v446 = vld [vmem:[%s378 + $0x18] sm:$0xff]
                  %447 = vst [vmem:[%s379 + $0x48] sm:$0xff] %v446
                  %v448 = vld [vmem:[%s378 + $0x20] sm:$0xff]
                  %449 = vst [vmem:[%s379 + $0x50] sm:$0xff] %v448
                  %v450 = vld [vmem:[%s378 + $0x28] sm:$0xff]
                  %451 = vst [vmem:[%s379 + $0x58] sm:$0xff] %v450
                  %v452 = vld [vmem:[%s378 + $0x30] sm:$0xff]
                  %453 = vst [vmem:[%s379 + $0x60] sm:$0xff] %v452
                  %v454 = vld [vmem:[%s378 + $0x38] sm:$0xff]
                  %455 = vst [vmem:[%s379 + $0x68] sm:$0xff] %v454
                  %v456 = vld [vmem:[%s378 + $0x40] sm:$0xff]
                  %457 = vst [vmem:[%s379 + $0x70] sm:$0xff] %v456
                  %v458 = vld [vmem:[%s378 + $0x48] sm:$0xff]
                  %459 = vst [vmem:[%s379 + $0x78] sm:$0xff] %v458
                  %v460 = vld [vmem:[%s378 + $0x50] sm:$0xff]
                  %461 = vst [vmem:[%s379 + $0x80] sm:$0xff] %v460
                  %v462 = vld [vmem:[%s378 + $0x58] sm:$0xff]
                  %463 = vst [vmem:[%s379 + $0x88] sm:$0xff] %v462
                  %v464 = vld [vmem:[%s378 + $0x60] sm:$0xff]
                  %465 = vst [vmem:[%s379 + $0x90] sm:$0xff] %v464
                  %v466 = vld [vmem:[%s378 + $0x68] sm:$0xff]
                  %467 = vst [vmem:[%s379 + $0x98] sm:$0xff] %v466
                  %v468 = vld [vmem:[%s378 + $0x70] sm:$0xff]
                  %469 = vst [vmem:[%s379 + $0xa0] sm:$0xff] %v468
                  %v470 = vld [vmem:[%s378 + $0x78] sm:$0xff]
                  %471 = vst [vmem:[%s379 + $0xa8] sm:$0xff] %v470
                  %v472 = vld [vmem:[%s378 + $0x80] sm:$0xff]
                  %473 = vst [vmem:[%s379 + $0xb0] sm:$0xff] %v472
                  %v474 = vld [vmem:[%s378 + $0x88] sm:$0xff]
                  %475 = vst [vmem:[%s379 + $0xb8] sm:$0xff] %v474
                  %v476 = vld [vmem:[%s378 + $0x18] sm:$0xff]
                  %477 = vst [vmem:[%s379 + $0x60] sm:$0xff] %v476
                  %v478 = vld [vmem:[%s378 + $0x20] sm:$0xff]
                  %479 = vst [vmem:[%s379 + $0x68] sm:$0xff] %v478
                  %v480 = vld [vmem:[%s378 + $0x28] sm:$0xff]
                  %481 = vst [vmem:[%s379 + $0x70] sm:$0xff] %v480
                  %v482 = vld [vmem:[%s378 + $0x30] sm:$0xff]
                  %483 = vst [vmem:[%s379 + $0x78] sm:$0xff] %v482
                  %v484 = vld [vmem:[%s378 + $0x38] sm:$0xff]
                  %485 = vst [vmem:[%s379 + $0x80] sm:$0xff] %v484
                  %v486 = vld [vmem:[%s378 + $0x40] sm:$0xff]
                  %487 = vst [vmem:[%s379 + $0x88] sm:$0xff] %v486
                  %v488 = vld [vmem:[%s378 + $0x48] sm:$0xff]
                  %489 = vst [vmem:[%s379 + $0x90] sm:$0xff] %v488
                  %v490 = vld [vmem:[%s378 + $0x50] sm:$0xff]
                  %491 = vst [vmem:[%s379 + $0x98] sm:$0xff] %v490
                  %v492 = vld [vmem:[%s378 + $0x58] sm:$0xff]
                  %493 = vst [vmem:[%s379 + $0xa0] sm:$0xff] %v492
                  %v494 = vld [vmem:[%s378 + $0x60] sm:$0xff]
                  %495 = vst [vmem:[%s379 + $0xa8] sm:$0xff] %v494
                  %v496 = vld [vmem:[%s378 + $0x68] sm:$0xff]
                  %497 = vst [vmem:[%s379 + $0xb0] sm:$0xff] %v496
                  %v498 = vld [vmem:[%s378 + $0x70] sm:$0xff]
                  %499 = vst [vmem:[%s379 + $0xb8] sm:$0xff] %v498
                  %v500 = vld [vmem:[%s378 + $0x78] sm:$0xff]
                  %501 = vst [vmem:[%s379 + $0xc0] sm:$0xff] %v500
                  %v502 = vld [vmem:[%s378 + $0x80] sm:$0xff]
                  %503 = vst [vmem:[%s379 + $0xc8] sm:$0xff] %v502
                  %v504 = vld [vmem:[%s378 + $0x88] sm:$0xff]
                  %505 = vst [vmem:[%s379 + $0xd0] sm:$0xff] %v504
                  %v506 = vld [vmem:[%s378 + $0x90] sm:$0xff]
                  %507 = vst [vmem:[%s379 + $0xd8] sm:$0xff] %v506
                  %s508 = sadd.s32 1, %s377
                  %p509 = scmp.ge.s32.totalorder %s508, %s368
                  %s510 = scalar_select %p509, 0, %s508
                  %s511 = smul.u32 %s510, 128
                  %s512 = smul.u32 %s510, 128
                  %s513 = scalar_lea.vmem %s142, %s511
                  %s514 = scalar_lea.vmem %s132, %s512 [#allocation3]
                $region70: #{tpu_custom_call.1} parent=64 // loop_footer
                  %s374 = sadd.s32 %s372, 1
                $region71: #{tpu_custom_call.1} parent=64 // loop_footer_branch
                  %371 = sbr.rel target = $region67
                $region72: #{tpu_custom_call.1} parent=64 // loop_exit
                  _
                %s515 = sshrl.u32 %s367, 4
                %s516 = sand.u32 %s367, 15
                %s517 = smul.u32 %s515, 16
                %s518 = smul.u32 128, %s517
                %s519 = sshra.s32 %s518, 4
                %s520 = scalar_lea.vmem %s142, %s519
                %s521 = smul.u32 128, %s517
                %s522 = sshra.s32 %s521, 4
                %s523 = scalar_lea.vmem %s132, %s522 [#allocation3]
                // While loop
                $region73: #{tpu_custom_call.1} parent=64 // loop_pre_header
                  _
                $region74: #{tpu_custom_call.1} parent=64 // loop_header
                  %s527 = sphi 0, %s529
                  %p528 = scmp.ge.s32.totalorder %s527, %s516
                  %s532 = sphi 0, %s545
                  %s533 = sphi %s520, %s548
                  %s534 = sphi %s523, %s549
                $region75: #{tpu_custom_call.1} parent=64 // loop_header_branch
                  %531 = sbr.rel (%p528) target = $region79
                $region76: #{tpu_custom_call.1} parent=64 // loop_body
                  %v535 = vld [vmem:[%s533] sm:$0xff]
                  %536 = vst [vmem:[%s534] sm:$0xff] %v535
                  %v537 = vld [vmem:[%s533 + $0x8] sm:$0xff]
                  %538 = vst [vmem:[%s534 + $0x20] sm:$0xff] %v537
                  %v539 = vld [vmem:[%s533 + $0x10] sm:$0xff]
                  %540 = vst [vmem:[%s534 + $0x40] sm:$0xff] %v539
                  %v541 = vld [vmem:[%s533 + $0x18] sm:$0xff]
                  %542 = vst [vmem:[%s534 + $0x60] sm:$0xff] %v541
                  %s543 = sadd.s32 1, %s532
                  %p544 = scmp.ge.s32.totalorder %s543, %s516
                  %s545 = scalar_select %p544, 0, %s543
                  %s546 = smul.u32 %s545, 8
                  %s547 = smul.u32 %s545, 8
                  %s548 = scalar_lea.vmem %s520, %s546
                  %s549 = scalar_lea.vmem %s523, %s547 [#allocation3]
                $region77: #{tpu_custom_call.1} parent=64 // loop_footer
                  %s529 = sadd.s32 %s527, 1
                $region78: #{tpu_custom_call.1} parent=64 // loop_footer_branch
                  %526 = sbr.rel target = $region74
                $region79: #{tpu_custom_call.1} parent=64 // loop_exit
                  _
                %s550 = sshllo.u32 0, %s362
                loop: start=0, step=1, limit=1
                $region80: #{tpu_custom_call.1} parent=64 // loop_pre_header
                  _
                $region81: #{tpu_custom_call.1} parent=64 // loop_header
                  %s552 = sphi 0, %s556
                  %p553 = scmp.ge.s32.totalorder %s552, 1
                  %s557 = sphi %s364, %s364
                  %s558 = sphi %s366, %s366
                $region82: #{tpu_custom_call.1} parent=64 // loop_header_branch
                  %555 = sbr.rel (%p553) target = $region86
                $region83: #{tpu_custom_call.1} parent=64 // loop_body
                  %v559 = vld [vmem:[%s557] sm:%s550]
                  %560 = vst [vmem:[%s558] sm:%s550] %v559
                  %v561 = vld [vmem:[%s557 + $0x8] sm:%s550]
                  %562 = vst [vmem:[%s558 + $0x20] sm:%s550] %v561
                  %v563 = vld [vmem:[%s557 + $0x10] sm:%s550]
                  %564 = vst [vmem:[%s558 + $0x40] sm:%s550] %v563
                  %v565 = vld [vmem:[%s557 + $0x18] sm:%s550]
                  %566 = vst [vmem:[%s558 + $0x60] sm:%s550] %v565
                $region84: #{tpu_custom_call.1} parent=64 // loop_footer
                  %s556 = sadd.s32 1, %s552
                $region85: #{tpu_custom_call.1} parent=64 // loop_footer_branch
                  %551 = sbr.rel target = $region81
                $region86: #{tpu_custom_call.1} parent=64 // loop_exit
                  _
              $region65: #{tpu_custom_call.1} parent=31 // pred_fallthru
                _
            $region32: #{tpu_custom_call.1} parent=27 // pred_fallthru
              _
            // Predicated region
            $region33: #{tpu_custom_call.1} parent=27 // pred_check
              %p151 = pneg %p147
            $region34: #{tpu_custom_call.1} parent=27 // pred_check_branch
              %153 = sbr.rel (%p151) target = $region36
            $region35: #{tpu_custom_call.1} parent=27 // pred_region
              %s154 = sshllo.u32 0, %s143
              loop: start=0, step=1, limit=1
              $region37: #{tpu_custom_call.1} parent=35 // loop_pre_header
                _
              $region38: #{tpu_custom_call.1} parent=35 // loop_header
                %s156 = sphi 0, %s160
                %p157 = scmp.ge.s32.totalorder %s156, 1
                %s161 = sphi %s142, %s142
                %s162 = sphi %s132, %s132
              $region39: #{tpu_custom_call.1} parent=35 // loop_header_branch
                %159 = sbr.rel (%p157) target = $region43
              $region40: #{tpu_custom_call.1} parent=35 // loop_body
                %v163 = vld [vmem:[%s161] sm:%s154]
                %164 = vst [vmem:[%s162] sm:%s154] %v163
                %v165 = vld [vmem:[%s161 + $0x8] sm:%s154]
                %166 = vst [vmem:[%s162 + $0x20] sm:%s154] %v165
                %v167 = vld [vmem:[%s161 + $0x10] sm:%s154]
                %168 = vst [vmem:[%s162 + $0x40] sm:%s154] %v167
                %v169 = vld [vmem:[%s161 + $0x18] sm:%s154]
                %170 = vst [vmem:[%s162 + $0x60] sm:%s154] %v169
              $region41: #{tpu_custom_call.1} parent=35 // loop_footer
                %s160 = sadd.s32 1, %s156
              $region42: #{tpu_custom_call.1} parent=35 // loop_footer_branch
                %155 = sbr.rel target = $region38
              $region43: #{tpu_custom_call.1} parent=35 // loop_exit
                _
            $region36: #{tpu_custom_call.1} parent=27 // pred_fallthru
              _
          $region28: #{tpu_custom_call.1} parent=23 // pred_fallthru
            _
          %567 = vnop
        $region24: #{tpu_custom_call.1} parent=19 // pred_fallthru
          _
      $region20: #{tpu_custom_call.1} parent=5 // pred_fallthru
        _
      %p568 = scmp.le.s32.totalorder 1, %s11
      %p569 = scmp.lt.s32.totalorder %s11, 3
      %p570 = pnand %p568, %p569
      %p571 = pneg %p570
      // Predicated region
      $region87: #{tpu_custom_call.1} parent=5 // pred_check
        _
      $region88: #{tpu_custom_call.1} parent=5 // pred_check_branch
        %573 = sbr.rel (%p570) target = $region90
      $region89: #{tpu_custom_call.1} parent=5 // pred_region
        %s574 = ssub.s32 %s11, 1
        %s575 = sand.u32 %s42, 1
        %s576 = sand.u32 %s42, 1
        %s577 = smul.addr %s576, 128
        %s578 = scalar_lea.vmem [#allocation3], %s577
        // Predicated region
        $region91: #{tpu_custom_call.1} parent=89 // pred_check
          %p579 = pneg %p55
        $region92: #{tpu_custom_call.1} parent=89 // pred_check_branch
          %581 = sbr.rel (%p579) target = $region94
        $region93: #{tpu_custom_call.1} parent=89 // pred_region
          _
        $region94: #{tpu_custom_call.1} parent=89 // pred_fallthru
          _
        %s582 = sand.u32 %s42, 1
        %s583 = sand.u32 %s42, 1
        %s584 = smul.addr %s583, 128
        %s585 = scalar_lea.vmem [#allocation3], %s584
        %p586 = pneg %p55
        %p587 = pneg %p52
        %p588 = pneg %p76
        %p589 = pneg %p73
        %p590 = pneg %p104
        %p591 = pneg %p101
        %s592 = sand.u32 %s91, 1
        %s593 = scalar_lea.sflag [#allocation5], %s592
        %s594 = sand.u32 %s91, 1
        %s595 = smul.addr %s594, 32
        %s596 = scalar_lea.vmem [#allocation4], %s595
        %p597 = scmp.lt.s32.totalorder %s21, 0
        %s598 = scalar_select %p597, %s21, 0
        %s599 = smul.u32 4, %s598
        %s600 = ssub.s32 1, %s599
        %s601 = smul.u32 512, %s600
        %v602 = vld [vmem:[%s1] sm:$0xff]
        %v603 = vld [vmem:[%s1 + $0x8] sm:$0xff]
        %v604 = vld [vmem:[%s1 + $0x10] sm:$0xff]
        %v605 = vld [vmem:[%s1 + $0x18] sm:$0xff]
        %v606 = vlaneseq
        %v607 = vand.u32 %v606, 127
        %v608 = vadd.s32 %v607, 128
        %v609 = vadd.s32 %v607, 256
        %v610 = vadd.s32 %v607, 384
        %p611 = scmp.eq.s32.totalorder %s21, 0
        // Predicated region
        $region95: #{tpu_custom_call.1} parent=89 // pred_check
          %p612 = pneg %p611
        $region96: #{tpu_custom_call.1} parent=89 // pred_check_branch
          %614 = sbr.rel (%p612) target = $region98
        $region97: #{tpu_custom_call.1} parent=89 // pred_region
          %615 = vst [vmem:[#allocation2] sm:$0xff] 0.0
        $region98: #{tpu_custom_call.1} parent=89 // pred_fallthru
          _
        %v616 = vld [vmem:[%s578] sm:$0xff]
        %v617 = vld [vmem:[%s578 + $0x8] sm:$0xff]
        %v618 = vld [vmem:[%s578 + $0x10] sm:$0xff]
        %v619 = vld [vmem:[%s578 + $0x18] sm:$0xff]
        %v620 = vld [vmem:[%s578 + $0x20] sm:$0xff]
        %v621 = vld [vmem:[%s578 + $0x28] sm:$0xff]
        %v622 = vld [vmem:[%s578 + $0x30] sm:$0xff]
        %v623 = vld [vmem:[%s578 + $0x38] sm:$0xff]
        %v624 = vld [vmem:[%s578 + $0x40] sm:$0xff]
        %v625 = vld [vmem:[%s578 + $0x48] sm:$0xff]
        %v626 = vld [vmem:[%s578 + $0x50] sm:$0xff]
        %v627 = vld [vmem:[%s578 + $0x58] sm:$0xff]
        %v628 = vld [vmem:[%s578 + $0x60] sm:$0xff]
        %v629 = vld [vmem:[%s578 + $0x68] sm:$0xff]
        %v630 = vld [vmem:[%s578 + $0x70] sm:$0xff]
        %v631 = vld [vmem:[%s578 + $0x78] sm:$0xff]
        %632 = vxpose.xlu0.b32.start [1/16] %v602, 128
        %633 = vxpose.xlu0.b32.cont [2/16] %v603, 128
        %634 = vxpose.xlu0.b32.cont [3/16] %v604, 128
        %635 = vxpose.xlu0.b32.cont [4/16] %v605, 128
        %636 = vxpose.xlu0.b32.cont [5/16] 0.0, 128
        %637 = vxpose.xlu0.b32.cont [6/16] 0.0, 128
        %638 = vxpose.xlu0.b32.cont [7/16] 0.0, 128
        %639 = vxpose.xlu0.b32.cont [8/16] 0.0, 128
        %640 = vxpose.xlu0.b32.cont [9/16] 0.0, 128
        %641 = vxpose.xlu0.b32.cont [10/16] 0.0, 128
        %642 = vxpose.xlu0.b32.cont [11/16] 0.0, 128
        %643 = vxpose.xlu0.b32.cont [12/16] 0.0, 128
        %644 = vxpose.xlu0.b32.cont [13/16] 0.0, 128
        %645 = vxpose.xlu0.b32.cont [14/16] 0.0, 128
        %646 = vxpose.xlu0.b32.cont [15/16] 0.0, 128
        %647 = vxpose.xlu0.b32.end [16/16] 0.0, 128
        %v648 = vpop.trf.xlu0
        %v649 = vpop.trf.xlu0
        %v650 = vpop.trf.xlu0
        %v651 = vpop.trf.xlu0
        %v652 = vpop.trf.xlu0
        %v653 = vpop.trf.xlu0
        %v654 = vpop.trf.xlu0
        %v655 = vpop.trf.xlu0
        %v656 = vpop.trf.xlu0
        %v657 = vpop.trf.xlu0
        %v658 = vpop.trf.xlu0
        %v659 = vpop.trf.xlu0
        %v660 = vpop.trf.xlu0
        %v661 = vpop.trf.xlu0
        %v662 = vpop.trf.xlu0
        %v663 = vpop.trf.xlu0
        %vm664 = vcmask 261120
        %v666 = vsel %vm664, %v648, 0
        %v669 = vsel %vm664, %v649, 0
        %v671 = vand.u32 %v617, 4294901760
        %672 = vmatprep.subr.mxu0 %v671
        %v673 = vand.u32 %v616, 4294901760
        %674 = vmatpush1.msra.mxu0 %v673
        %v675 = vand.u32 %v621, 4294901760
        %676 = vmatprep.subr.mxu0 %v675
        %v677 = vand.u32 %v620, 4294901760
        %678 = vmatpush1.msra.mxu0 %v677
        %v679 = vand.u32 %v625, 4294901760
        %680 = vmatprep.subr.mxu0 %v679
        %v681 = vand.u32 %v624, 4294901760
        %682 = vmatpush1.msra.mxu0 %v681
        %v683 = vand.u32 %v629, 4294901760
        %684 = vmatprep.subr.mxu0 %v683
        %v685 = vand.u32 %v628, 4294901760
        %686 = vmatpush1.msra.mxu0 %v685
        %687 = vmatprep.subr.mxu0 0.0
        %688 = vmatpush1.msra.mxu0 0.0
        %689 = vmatprep.subr.mxu0 0.0
        %690 = vmatpush1.msra.mxu0 0.0
        %691 = vmatprep.subr.mxu0 0.0
        %692 = vmatpush1.msra.mxu0 0.0
        %693 = vmatprep.subr.mxu0 0.0
        %694 = vmatpush1.msra.mxu0 0.0
        %695 = vmatprep.subr.mxu0 0.0
        %696 = vmatpush1.msra.mxu0 0.0
        %697 = vmatprep.subr.mxu0 0.0
        %698 = vmatpush1.msra.mxu0 0.0
        %699 = vmatprep.subr.mxu0 0.0
        %700 = vmatpush1.msra.mxu0 0.0
        %701 = vmatprep.subr.mxu0 0.0
        %702 = vmatpush1.msra.mxu0 0.0
        %703 = vmatprep.subr.mxu0 0.0
        %704 = vmatpush1.msra.mxu0 0.0
        %705 = vmatprep.subr.mxu0 0.0
        %706 = vmatpush1.msra.mxu0 0.0
        %707 = vmatprep.subr.mxu0 0.0
        %708 = vmatpush1.msra.mxu0 0.0
        %709 = vmatprep.subr.mxu0 0.0
        %710 = vmatpush1.msra.mxu0 0.0
        %711 = vmatprep.subr.mxu0 0.0
        %712 = vmatpush1.msra.mxu0 0.0
        %713 = vmatprep.subr.mxu0 0.0
        %714 = vmatpush1.msra.mxu0 0.0
        %715 = vmatprep.subr.mxu0 0.0
        %716 = vmatpush1.msra.mxu0 0.0
        %717 = vmatprep.subr.mxu0 0.0
        %718 = vmatpush1.msra.mxu0 0.0
        %719 = vmatprep.subr.mxu0 0.0
        %720 = vmatpush1.msra.mxu0 0.0
        %721 = vmatprep.subr.mxu0 0.0
        %722 = vmatpush1.msra.mxu0 0.0
        %723 = vmatprep.subr.mxu0 0.0
        %724 = vmatpush1.msra.mxu0 0.0
        %725 = vmatprep.subr.mxu0 0.0
        %726 = vmatpush1.msra.mxu0 0.0
        %727 = vmatprep.subr.mxu0 0.0
        %728 = vmatpush1.msra.mxu0 0.0
        %729 = vmatprep.subr.mxu0 0.0
        %730 = vmatpush1.msra.mxu0 0.0
        %731 = vmatprep.subr.mxu0 0.0
        %732 = vmatpush1.msra.mxu0 0.0
        %733 = vmatprep.subr.mxu0 0.0
        %734 = vmatpush1.msra.mxu0 0.0
        %735 = vmatprep.subr.mxu0 0.0
        %736 = vmatpush1.msra.mxu0 0.0
        %737 = vmatprep.subr.mxu0 0.0
        %738 = vmatpush1.msra.mxu0 0.0
        %739 = vmatprep.subr.mxu0 0.0
        %740 = vmatpush1.msra.mxu0 0.0
        %741 = vmatprep.subr.mxu0 0.0
        %742 = vmatpush1.msra.mxu0 0.0
        %743 = vmatprep.mubr.f32.mxu0 0.0
        %v744 = vand.u32 %v666, 4294901760
        %v745 = vsub.f32 %v666, %v744
        %v746 = vand.u32 %v745, 4294901760
        %v747 = vsub.f32 %v745, %v746
        %v748 = vand.u32 %v747, 4294901760
        %749 = vmatmul.mubr.f32.gmra.mrb[0].mxu0 %v748
        %v750 = vpop.f32.mrb[0].mxu0
        %v751 = vadd.f32 0.0, %v750
        %v752 = vpop.f32.mrb[0].mxu0
        %v753 = vadd.f32 0.0, %v752
        %754 = vmatprep.mubr.f32.mxu0 0.0
        %v755 = vand.u32 %v669, 4294901760
        %v756 = vsub.f32 %v669, %v755
        %v757 = vand.u32 %v756, 4294901760
        %v758 = vsub.f32 %v756, %v757
        %v759 = vand.u32 %v758, 4294901760
        %760 = vmatmul.mubr.f32.gmra.mrb[0].mxu0 %v759
        %v761 = vpop.f32.mrb[0].mxu0
        %v762 = vadd.f32 0.0, %v761
        %v763 = vpop.f32.mrb[0].mxu0
        %v764 = vadd.f32 0.0, %v763
        %765 = vdwg.mxu0
        %v766 = vand.u32 %v617, 4294901760
        %v767 = vsub.f32 %v617, %v766
        %v768 = vand.u32 %v767, 4294901760
        %v769 = vsub.f32 %v767, %v768
        %v770 = vand.u32 %v769, 4294901760
        %771 = vmatprep.subr.mxu0 %v770
        %v772 = vand.u32 %v616, 4294901760
        %v773 = vsub.f32 %v616, %v772
        %v774 = vand.u32 %v773, 4294901760
        %v775 = vsub.f32 %v773, %v774
        %v776 = vand.u32 %v775, 4294901760
        %777 = vmatpush1.msra.mxu0 %v776
        %v778 = vand.u32 %v621, 4294901760
        %v779 = vsub.f32 %v621, %v778
        %v780 = vand.u32 %v779, 4294901760
        %v781 = vsub.f32 %v779, %v780
        %v782 = vand.u32 %v781, 4294901760
        %783 = vmatprep.subr.mxu0 %v782
        %v784 = vand.u32 %v620, 4294901760
        %v785 = vsub.f32 %v620, %v784
        %v786 = vand.u32 %v785, 4294901760
        %v787 = vsub.f32 %v785, %v786
        %v788 = vand.u32 %v787, 4294901760
        %789 = vmatpush1.msra.mxu0 %v788
        %v790 = vand.u32 %v625, 4294901760
        %v791 = vsub.f32 %v625, %v790
        %v792 = vand.u32 %v791, 4294901760
        %v793 = vsub.f32 %v791, %v792
        %v794 = vand.u32 %v793, 4294901760
        %795 = vmatprep.subr.mxu0 %v794
        %v796 = vand.u32 %v624, 4294901760
        %v797 = vsub.f32 %v624, %v796
        %v798 = vand.u32 %v797, 4294901760
        %v799 = vsub.f32 %v797, %v798
        %v800 = vand.u32 %v799, 4294901760
        %801 = vmatpush1.msra.mxu0 %v800
        %v802 = vand.u32 %v629, 4294901760
        %v803 = vsub.f32 %v629, %v802
        %v804 = vand.u32 %v803, 4294901760
        %v805 = vsub.f32 %v803, %v804
        %v806 = vand.u32 %v805, 4294901760
        %807 = vmatprep.subr.mxu0 %v806
        %v808 = vand.u32 %v628, 4294901760
        %v809 = vsub.f32 %v628, %v808
        %v810 = vand.u32 %v809, 4294901760
        %v811 = vsub.f32 %v809, %v810
        %v812 = vand.u32 %v811, 4294901760
        %813 = vmatpush1.msra.mxu0 %v812
        %814 = vmatprep.subr.mxu0 0.0
        %815 = vmatpush1.msra.mxu0 0.0
        %816 = vmatprep.subr.mxu0 0.0
        %817 = vmatpush1.msra.mxu0 0.0
        %818 = vmatprep.subr.mxu0 0.0
        %819 = vmatpush1.msra.mxu0 0.0
        %820 = vmatprep.subr.mxu0 0.0
        %821 = vmatpush1.msra.mxu0 0.0
        %822 = vmatprep.subr.mxu0 0.0
        %823 = vmatpush1.msra.mxu0 0.0
        %824 = vmatprep.subr.mxu0 0.0
        %825 = vmatpush1.msra.mxu0 0.0
        %826 = vmatprep.subr.mxu0 0.0
        %827 = vmatpush1.msra.mxu0 0.0
        %828 = vmatprep.subr.mxu0 0.0
        %829 = vmatpush1.msra.mxu0 0.0
        %830 = vmatprep.subr.mxu0 0.0
        %831 = vmatpush1.msra.mxu0 0.0
        %832 = vmatprep.subr.mxu0 0.0
        %833 = vmatpush1.msra.mxu0 0.0
        %834 = vmatprep.subr.mxu0 0.0
        %835 = vmatpush1.msra.mxu0 0.0
        %836 = vmatprep.subr.mxu0 0.0
        %837 = vmatpush1.msra.mxu0 0.0
        %838 = vmatprep.subr.mxu0 0.0
        %839 = vmatpush1.msra.mxu0 0.0
        %840 = vmatprep.subr.mxu0 0.0
        %841 = vmatpush1.msra.mxu0 0.0
        %842 = vmatprep.subr.mxu0 0.0
        %843 = vmatpush1.msra.mxu0 0.0
        %844 = vmatprep.subr.mxu0 0.0
        %845 = vmatpush1.msra.mxu0 0.0
        %846 = vmatprep.subr.mxu0 0.0
        %847 = vmatpush1.msra.mxu0 0.0
        %848 = vmatprep.subr.mxu0 0.0
        %849 = vmatpush1.msra.mxu0 0.0
        %850 = vmatprep.subr.mxu0 0.0
        %851 = vmatpush1.msra.mxu0 0.0
        %852 = vmatprep.subr.mxu0 0.0
        %853 = vmatpush1.msra.mxu0 0.0
        %854 = vmatprep.subr.mxu0 0.0
        %855 = vmatpush1.msra.mxu0 0.0
        %856 = vmatprep.subr.mxu0 0.0
        %857 = vmatpush1.msra.mxu0 0.0
        %858 = vmatprep.subr.mxu0 0.0
        %859 = vmatpush1.msra.mxu0 0.0
        %860 = vmatprep.subr.mxu0 0.0
        %861 = vmatpush1.msra.mxu0 0.0
        %862 = vmatprep.subr.mxu0 0.0
        %863 = vmatpush1.msra.mxu0 0.0
        %864 = vmatprep.subr.mxu0 0.0
        %865 = vmatpush1.msra.mxu0 0.0
        %866 = vmatprep.subr.mxu0 0.0
        %867 = vmatpush1.msra.mxu0 0.0
        %868 = vmatprep.subr.mxu0 0.0
        %869 = vmatpush1.msra.mxu0 0.0
        %870 = vmatprep.mubr.f32.mxu0 0.0
        %v871 = vand.u32 %v666, 4294901760
        %872 = vmatmul.mubr.f32.gmra.mrb[0].mxu0 %v871
        %v873 = vpop.f32.mrb[0].mxu0
        %v874 = vadd.f32 %v751, %v873
        %v875 = vpop.f32.mrb[0].mxu0
        %v876 = vadd.f32 %v753, %v875
        %877 = vmatprep.mubr.f32.mxu0 0.0
        %v878 = vand.u32 %v669, 4294901760
        %879 = vmatmul.mubr.f32.gmra.mrb[0].mxu0 %v878
        %v880 = vpop.f32.mrb[0].mxu0
        %v881 = vadd.f32 %v762, %v880
        %v882 = vpop.f32.mrb[0].mxu0
        %v883 = vadd.f32 %v764, %v882
        %884 = vdwg.mxu0
        %v885 = vand.u32 %v617, 4294901760
        %v886 = vsub.f32 %v617, %v885
        %887 = vmatprep.subr.mxu0 %v886
        %v888 = vand.u32 %v616, 4294901760
        %v889 = vsub.f32 %v616, %v888
        %890 = vmatpush1.msra.mxu0 %v889
        %v891 = vand.u32 %v621, 4294901760
        %v892 = vsub.f32 %v621, %v891
        %893 = vmatprep.subr.mxu0 %v892
        %v894 = vand.u32 %v620, 4294901760
        %v895 = vsub.f32 %v620, %v894
        %896 = vmatpush1.msra.mxu0 %v895
        %v897 = vand.u32 %v625, 4294901760
        %v898 = vsub.f32 %v625, %v897
        %899 = vmatprep.subr.mxu0 %v898
        %v900 = vand.u32 %v624, 4294901760
        %v901 = vsub.f32 %v624, %v900
        %902 = vmatpush1.msra.mxu0 %v901
        %v903 = vand.u32 %v629, 4294901760
        %v904 = vsub.f32 %v629, %v903
        %905 = vmatprep.subr.mxu0 %v904
        %v906 = vand.u32 %v628, 4294901760
        %v907 = vsub.f32 %v628, %v906
        %908 = vmatpush1.msra.mxu0 %v907
        %909 = vmatprep.subr.mxu0 0.0
        %910 = vmatpush1.msra.mxu0 0.0
        %911 = vmatprep.subr.mxu0 0.0
        %912 = vmatpush1.msra.mxu0 0.0
        %913 = vmatprep.subr.mxu0 0.0
        %914 = vmatpush1.msra.mxu0 0.0
        %915 = vmatprep.subr.mxu0 0.0
        %916 = vmatpush1.msra.mxu0 0.0
        %917 = vmatprep.subr.mxu0 0.0
        %918 = vmatpush1.msra.mxu0 0.0
        %919 = vmatprep.subr.mxu0 0.0
        %920 = vmatpush1.msra.mxu0 0.0
        %921 = vmatprep.subr.mxu0 0.0
        %922 = vmatpush1.msra.mxu0 0.0
        %923 = vmatprep.subr.mxu0 0.0
        %924 = vmatpush1.msra.mxu0 0.0
        %925 = vmatprep.subr.mxu0 0.0
        %926 = vmatpush1.msra.mxu0 0.0
        %927 = vmatprep.subr.mxu0 0.0
        %928 = vmatpush1.msra.mxu0 0.0
        %929 = vmatprep.subr.mxu0 0.0
        %930 = vmatpush1.msra.mxu0 0.0
        %931 = vmatprep.subr.mxu0 0.0
        %932 = vmatpush1.msra.mxu0 0.0
        %933 = vmatprep.subr.mxu0 0.0
        %934 = vmatpush1.msra.mxu0 0.0
        %935 = vmatprep.subr.mxu0 0.0
        %936 = vmatpush1.msra.mxu0 0.0
        %937 = vmatprep.subr.mxu0 0.0
        %938 = vmatpush1.msra.mxu0 0.0
        %939 = vmatprep.subr.mxu0 0.0
        %940 = vmatpush1.msra.mxu0 0.0
        %941 = vmatprep.subr.mxu0 0.0
        %942 = vmatpush1.msra.mxu0 0.0
        %943 = vmatprep.subr.mxu0 0.0
        %944 = vmatpush1.msra.mxu0 0.0
        %945 = vmatprep.subr.mxu0 0.0
        %946 = vmatpush1.msra.mxu0 0.0
        %947 = vmatprep.subr.mxu0 0.0
        %948 = vmatpush1.msra.mxu0 0.0
        %949 = vmatprep.subr.mxu0 0.0
        %950 = vmatpush1.msra.mxu0 0.0
        %951 = vmatprep.subr.mxu0 0.0
        %952 = vmatpush1.msra.mxu0 0.0
        %953 = vmatprep.subr.mxu0 0.0
        %954 = vmatpush1.msra.mxu0 0.0
        %955 = vmatprep.subr.mxu0 0.0
        %956 = vmatpush1.msra.mxu0 0.0
        %957 = vmatprep.subr.mxu0 0.0
        %958 = vmatpush1.msra.mxu0 0.0
        %959 = vmatprep.subr.mxu0 0.0
        %960 = vmatpush1.msra.mxu0 0.0
        %961 = vmatprep.subr.mxu0 0.0
        %962 = vmatpush1.msra.mxu0 0.0
        %963 = vmatprep.subr.mxu0 0.0
        %964 = vmatpush1.msra.mxu0 0.0
        %965 = vmatprep.mubr.f32.mxu0 0.0
        %v966 = vand.u32 %v666, 4294901760
        %v967 = vsub.f32 %v666, %v966
        %968 = vmatmul.mubr.f32.gmra.mrb[0].mxu0 %v967
        %v969 = vpop.f32.mrb[0].mxu0
        %v970 = vadd.f32 %v874, %v969
        %v971 = vpop.f32.mrb[0].mxu0
        %v972 = vadd.f32 %v876, %v971
        %973 = vmatprep.mubr.f32.mxu0 0.0
        %v974 = vand.u32 %v669, 4294901760
        %v975 = vsub.f32 %v669, %v974
        %976 = vmatmul.mubr.f32.gmra.mrb[0].mxu0 %v975
        %v977 = vpop.f32.mrb[0].mxu0
        %v978 = vadd.f32 %v881, %v977
        %v979 = vpop.f32.mrb[0].mxu0
        %v980 = vadd.f32 %v883, %v979
        %981 = vdwg.mxu0
        %v982 = vand.u32 %v617, 4294901760
        %983 = vmatprep.subr.mxu0 %v982
        %v984 = vand.u32 %v616, 4294901760
        %985 = vmatpush1.msra.mxu0 %v984
        %v986 = vand.u32 %v621, 4294901760
        %987 = vmatprep.subr.mxu0 %v986
        %v988 = vand.u32 %v620, 4294901760
        %989 = vmatpush1.msra.mxu0 %v988
        %v990 = vand.u32 %v625, 4294901760
        %991 = vmatprep.subr.mxu0 %v990
        %v992 = vand.u32 %v624, 4294901760
        %993 = vmatpush1.msra.mxu0 %v992
        %v994 = vand.u32 %v629, 4294901760
        %995 = vmatprep.subr.mxu0 %v994
        %v996 = vand.u32 %v628, 4294901760
        %997 = vmatpush1.msra.mxu0 %v996
        %998 = vmatprep.subr.mxu0 0.0
        %999 = vmatpush1.msra.mxu0 0.0
        %1000 = vmatprep.subr.mxu0 0.0
        %1001 = vmatpush1.msra.mxu0 0.0
        %1002 = vmatprep.subr.mxu0 0.0
        %1003 = vmatpush1.msra.mxu0 0.0
        %1004 = vmatprep.subr.mxu0 0.0
        %1005 = vmatpush1.msra.mxu0 0.0
        %1006 = vmatprep.subr.mxu0 0.0
        %1007 = vmatpush1.msra.mxu0 0.0
        %1008 = vmatprep.subr.mxu0 0.0
        %1009 = vmatpush1.msra.mxu0 0.0
        %1010 = vmatprep.subr.mxu0 0.0
        %1011 = vmatpush1.msra.mxu0 0.0
        %1012 = vmatprep.subr.mxu0 0.0
        %1013 = vmatpush1.msra.mxu0 0.0
        %1014 = vmatprep.subr.mxu0 0.0
        %1015 = vmatpush1.msra.mxu0 0.0
        %1016 = vmatprep.subr.mxu0 0.0
        %1017 = vmatpush1.msra.mxu0 0.0
        %1018 = vmatprep.subr.mxu0 0.0
        %1019 = vmatpush1.msra.mxu0 0.0
        %1020 = vmatprep.subr.mxu0 0.0
        %1021 = vmatpush1.msra.mxu0 0.0
        %1022 = vmatprep.subr.mxu0 0.0
        %1023 = vmatpush1.msra.mxu0 0.0
        %1024 = vmatprep.subr.mxu0 0.0
        %1025 = vmatpush1.msra.mxu0 0.0
        %1026 = vmatprep.subr.mxu0 0.0
        %1027 = vmatpush1.msra.mxu0 0.0
        %1028 = vmatprep.subr.mxu0 0.0
        %1029 = vmatpush1.msra.mxu0 0.0
        %1030 = vmatprep.subr.mxu0 0.0
        %1031 = vmatpush1.msra.mxu0 0.0
        %1032 = vmatprep.subr.mxu0 0.0
        %1033 = vmatpush1.msra.mxu0 0.0
        %1034 = vmatprep.subr.mxu0 0.0
        %1035 = vmatpush1.msra.mxu0 0.0
        %1036 = vmatprep.subr.mxu0 0.0
        %1037 = vmatpush1.msra.mxu0 0.0
        %1038 = vmatprep.subr.mxu0 0.0
        %1039 = vmatpush1.msra.mxu0 0.0
        %1040 = vmatprep.subr.mxu0 0.0
        %1041 = vmatpush1.msra.mxu0 0.0
        %1042 = vmatprep.subr.mxu0 0.0
        %1043 = vmatpush1.msra.mxu0 0.0
        %1044 = vmatprep.subr.mxu0 0.0
        %1045 = vmatpush1.msra.mxu0 0.0
        %1046 = vmatprep.subr.mxu0 0.0
        %1047 = vmatpush1.msra.mxu0 0.0
        %1048 = vmatprep.subr.mxu0 0.0
        %1049 = vmatpush1.msra.mxu0 0.0
        %1050 = vmatprep.subr.mxu0 0.0
        %1051 = vmatpush1.msra.mxu0 0.0
        %1052 = vmatprep.subr.mxu0 0.0
        %1053 = vmatpush1.msra.mxu0 0.0
        %1054 = vmatprep.mubr.f32.mxu0 0.0
        %v1055 = vand.u32 %v666, 4294901760
        %v1056 = vsub.f32 %v666, %v1055
        %v1057 = vand.u32 %v1056, 4294901760
        %1058 = vmatmul.mubr.f32.gmra.mrb[0].mxu0 %v1057
        %v1059 = vpop.f32.mrb[0].mxu0
        %v1060 = vadd.f32 %v970, %v1059
        %v1061 = vpop.f32.mrb[0].mxu0
        %v1062 = vadd.f32 %v972, %v1061
        %1063 = vmatprep.mubr.f32.mxu0 0.0
        %v1064 = vand.u32 %v669, 4294901760
        %v1065 = vsub.f32 %v669, %v1064
        %v1066 = vand.u32 %v1065, 4294901760
        %1067 = vmatmul.mubr.f32.gmra.mrb[0].mxu0 %v1066
        %v1068 = vpop.f32.mrb[0].mxu0
        %v1069 = vadd.f32 %v978, %v1068
        %v1070 = vpop.f32.mrb[0].mxu0
        %v1071 = vadd.f32 %v980, %v1070
        %1072 = vdwg.mxu0
        %v1073 = vand.u32 %v617, 4294901760
        %v1074 = vsub.f32 %v617, %v1073
        %v1075 = vand.u32 %v1074, 4294901760
        %1076 = vmatprep.subr.mxu0 %v1075
        %v1077 = vand.u32 %v616, 4294901760
        %v1078 = vsub.f32 %v616, %v1077
        %v1079 = vand.u32 %v1078, 4294901760
        %1080 = vmatpush1.msra.mxu0 %v1079
        %v1081 = vand.u32 %v621, 4294901760
        %v1082 = vsub.f32 %v621, %v1081
        %v1083 = vand.u32 %v1082, 4294901760
        %1084 = vmatprep.subr.mxu0 %v1083
        %v1085 = vand.u32 %v620, 4294901760
        %v1086 = vsub.f32 %v620, %v1085
        %v1087 = vand.u32 %v1086, 4294901760
        %1088 = vmatpush1.msra.mxu0 %v1087
        %v1089 = vand.u32 %v625, 4294901760
        %v1090 = vsub.f32 %v625, %v1089
        %v1091 = vand.u32 %v1090, 4294901760
        %1092 = vmatprep.subr.mxu0 %v1091
        %v1093 = vand.u32 %v624, 4294901760
        %v1094 = vsub.f32 %v624, %v1093
        %v1095 = vand.u32 %v1094, 4294901760
        %1096 = vmatpush1.msra.mxu0 %v1095
        %v1097 = vand.u32 %v629, 4294901760
        %v1098 = vsub.f32 %v629, %v1097
        %v1099 = vand.u32 %v1098, 4294901760
        %1100 = vmatprep.subr.mxu0 %v1099
        %v1101 = vand.u32 %v628, 4294901760
        %v1102 = vsub.f32 %v628, %v1101
        %v1103 = vand.u32 %v1102, 4294901760
        %1104 = vmatpush1.msra.mxu0 %v1103
        %1105 = vmatprep.subr.mxu0 0.0
        %1106 = vmatpush1.msra.mxu0 0.0
        %1107 = vmatprep.subr.mxu0 0.0
        %1108 = vmatpush1.msra.mxu0 0.0
        %1109 = vmatprep.subr.mxu0 0.0
        %1110 = vmatpush1.msra.mxu0 0.0
        %1111 = vmatprep.subr.mxu0 0.0
        %1112 = vmatpush1.msra.mxu0 0.0
        %1113 = vmatprep.subr.mxu0 0.0
        %1114 = vmatpush1.msra.mxu0 0.0
        %1115 = vmatprep.subr.mxu0 0.0
        %1116 = vmatpush1.msra.mxu0 0.0
        %1117 = vmatprep.subr.mxu0 0.0
        %1118 = vmatpush1.msra.mxu0 0.0
        %1119 = vmatprep.subr.mxu0 0.0
        %1120 = vmatpush1.msra.mxu0 0.0
        %1121 = vmatprep.subr.mxu0 0.0
        %1122 = vmatpush1.msra.mxu0 0.0
        %1123 = vmatprep.subr.mxu0 0.0
        %1124 = vmatpush1.msra.mxu0 0.0
        %1125 = vmatprep.subr.mxu0 0.0
        %1126 = vmatpush1.msra.mxu0 0.0
        %1127 = vmatprep.subr.mxu0 0.0
        %1128 = vmatpush1.msra.mxu0 0.0
        %1129 = vmatprep.subr.mxu0 0.0
        %1130 = vmatpush1.msra.mxu0 0.0
        %1131 = vmatprep.subr.mxu0 0.0
        %1132 = vmatpush1.msra.mxu0 0.0
        %1133 = vmatprep.subr.mxu0 0.0
        %1134 = vmatpush1.msra.mxu0 0.0
        %1135 = vmatprep.subr.mxu0 0.0
        %1136 = vmatpush1.msra.mxu0 0.0
        %1137 = vmatprep.subr.mxu0 0.0
        %1138 = vmatpush1.msra.mxu0 0.0
        %1139 = vmatprep.subr.mxu0 0.0
        %1140 = vmatpush1.msra.mxu0 0.0
        %1141 = vmatprep.subr.mxu0 0.0
        %1142 = vmatpush1.msra.mxu0 0.0
        %1143 = vmatprep.subr.mxu0 0.0
        %1144 = vmatpush1.msra.mxu0 0.0
        %1145 = vmatprep.subr.mxu0 0.0
        %1146 = vmatpush1.msra.mxu0 0.0
        %1147 = vmatprep.subr.mxu0 0.0
        %1148 = vmatpush1.msra.mxu0 0.0
        %1149 = vmatprep.subr.mxu0 0.0
        %1150 = vmatpush1.msra.mxu0 0.0
        %1151 = vmatprep.subr.mxu0 0.0
        %1152 = vmatpush1.msra.mxu0 0.0
        %1153 = vmatprep.subr.mxu0 0.0
        %1154 = vmatpush1.msra.mxu0 0.0
        %1155 = vmatprep.subr.mxu0 0.0
        %1156 = vmatpush1.msra.mxu0 0.0
        %1157 = vmatprep.subr.mxu0 0.0
        %1158 = vmatpush1.msra.mxu0 0.0
        %1159 = vmatprep.subr.mxu0 0.0
        %1160 = vmatpush1.msra.mxu0 0.0
        %1161 = vmatprep.mubr.f32.mxu0 0.0
        %v1162 = vand.u32 %v666, 4294901760
        %1163 = vmatmul.mubr.f32.gmra.mrb[0].mxu0 %v1162
        %v1164 = vpop.f32.mrb[0].mxu0
        %v1165 = vadd.f32 %v1060, %v1164
        %v1166 = vpop.f32.mrb[0].mxu0
        %v1167 = vadd.f32 %v1062, %v1166
        %1168 = vmatprep.mubr.f32.mxu0 0.0
        %v1169 = vand.u32 %v669, 4294901760
        %1170 = vmatmul.mubr.f32.gmra.mrb[0].mxu0 %v1169
        %v1171 = vpop.f32.mrb[0].mxu0
        %v1172 = vadd.f32 %v1069, %v1171
        %v1173 = vpop.f32.mrb[0].mxu0
        %v1174 = vadd.f32 %v1071, %v1173
        %1175 = vdwg.mxu0
        %v1176 = vand.u32 %v617, 4294901760
        %1177 = vmatprep.subr.mxu0 %v1176
        %v1178 = vand.u32 %v616, 4294901760
        %1179 = vmatpush1.msra.mxu0 %v1178
        %v1180 = vand.u32 %v621, 4294901760
        %1181 = vmatprep.subr.mxu0 %v1180
        %v1182 = vand.u32 %v620, 4294901760
        %1183 = vmatpush1.msra.mxu0 %v1182
        %v1184 = vand.u32 %v625, 4294901760
        %1185 = vmatprep.subr.mxu0 %v1184
        %v1186 = vand.u32 %v624, 4294901760
        %1187 = vmatpush1.msra.mxu0 %v1186
        %v1188 = vand.u32 %v629, 4294901760
        %1189 = vmatprep.subr.mxu0 %v1188
        %v1190 = vand.u32 %v628, 4294901760
        %1191 = vmatpush1.msra.mxu0 %v1190
        %1192 = vmatprep.subr.mxu0 0.0
        %1193 = vmatpush1.msra.mxu0 0.0
        %1194 = vmatprep.subr.mxu0 0.0
        %1195 = vmatpush1.msra.mxu0 0.0
        %1196 = vmatprep.subr.mxu0 0.0
        %1197 = vmatpush1.msra.mxu0 0.0
        %1198 = vmatprep.subr.mxu0 0.0
        %1199 = vmatpush1.msra.mxu0 0.0
        %1200 = vmatprep.subr.mxu0 0.0
        %1201 = vmatpush1.msra.mxu0 0.0
        %1202 = vmatprep.subr.mxu0 0.0
        %1203 = vmatpush1.msra.mxu0 0.0
        %1204 = vmatprep.subr.mxu0 0.0
        %1205 = vmatpush1.msra.mxu0 0.0
        %1206 = vmatprep.subr.mxu0 0.0
        %1207 = vmatpush1.msra.mxu0 0.0
        %1208 = vmatprep.subr.mxu0 0.0
        %1209 = vmatpush1.msra.mxu0 0.0
        %1210 = vmatprep.subr.mxu0 0.0
        %1211 = vmatpush1.msra.mxu0 0.0
        %1212 = vmatprep.subr.mxu0 0.0
        %1213 = vmatpush1.msra.mxu0 0.0
        %1214 = vmatprep.subr.mxu0 0.0
        %1215 = vmatpush1.msra.mxu0 0.0
        %1216 = vmatprep.subr.mxu0 0.0
        %1217 = vmatpush1.msra.mxu0 0.0
        %1218 = vmatprep.subr.mxu0 0.0
        %1219 = vmatpush1.msra.mxu0 0.0
        %1220 = vmatprep.subr.mxu0 0.0
        %1221 = vmatpush1.msra.mxu0 0.0
        %1222 = vmatprep.subr.mxu0 0.0
        %1223 = vmatpush1.msra.mxu0 0.0
        %1224 = vmatprep.subr.mxu0 0.0
        %1225 = vmatpush1.msra.mxu0 0.0
        %1226 = vmatprep.subr.mxu0 0.0
        %1227 = vmatpush1.msra.mxu0 0.0
        %1228 = vmatprep.subr.mxu0 0.0
        %1229 = vmatpush1.msra.mxu0 0.0
        %1230 = vmatprep.subr.mxu0 0.0
        %1231 = vmatpush1.msra.mxu0 0.0
        %1232 = vmatprep.subr.mxu0 0.0
        %1233 = vmatpush1.msra.mxu0 0.0
        %1234 = vmatprep.subr.mxu0 0.0
        %1235 = vmatpush1.msra.mxu0 0.0
        %1236 = vmatprep.subr.mxu0 0.0
        %1237 = vmatpush1.msra.mxu0 0.0
        %1238 = vmatprep.subr.mxu0 0.0
        %1239 = vmatpush1.msra.mxu0 0.0
        %1240 = vmatprep.subr.mxu0 0.0
        %1241 = vmatpush1.msra.mxu0 0.0
        %1242 = vmatprep.subr.mxu0 0.0
        %1243 = vmatpush1.msra.mxu0 0.0
        %1244 = vmatprep.subr.mxu0 0.0
        %1245 = vmatpush1.msra.mxu0 0.0
        %1246 = vmatprep.subr.mxu0 0.0
        %1247 = vmatpush1.msra.mxu0 0.0
        %1248 = vmatprep.mubr.f32.mxu0 0.0
        %v1249 = vand.u32 %v666, 4294901760
        %1250 = vmatmul.mubr.f32.gmra.mrb[0].mxu0 %v1249
        %v1251 = vpop.f32.mrb[0].mxu0
        %v1252 = vadd.f32 %v1165, %v1251
        %v1253 = vpop.f32.mrb[0].mxu0
        %v1254 = vadd.f32 %v1167, %v1253
        %1255 = vmatprep.mubr.f32.mxu0 0.0
        %v1256 = vand.u32 %v669, 4294901760
        %1257 = vmatmul.mubr.f32.gmra.mrb[0].mxu0 %v1256
        %v1258 = vpop.f32.mrb[0].mxu0
        %v1259 = vadd.f32 %v1172, %v1258
        %v1260 = vpop.f32.mrb[0].mxu0
        %v1261 = vadd.f32 %v1174, %v1260
        %1262 = vdwg.mxu0
        %v1263 = vand.u32 %v619, 4294901760
        %1264 = vmatprep.subr.mxu0 %v1263
        %v1265 = vand.u32 %v618, 4294901760
        %1266 = vmatpush1.msra.mxu0 %v1265
        %v1267 = vand.u32 %v623, 4294901760
        %1268 = vmatprep.subr.mxu0 %v1267
        %v1269 = vand.u32 %v622, 4294901760
        %1270 = vmatpush1.msra.mxu0 %v1269
        %v1271 = vand.u32 %v627, 4294901760
        %1272 = vmatprep.subr.mxu0 %v1271
        %v1273 = vand.u32 %v626, 4294901760
        %1274 = vmatpush1.msra.mxu0 %v1273
        %v1275 = vand.u32 %v631, 4294901760
        %1276 = vmatprep.subr.mxu0 %v1275
        %v1277 = vand.u32 %v630, 4294901760
        %1278 = vmatpush1.msra.mxu0 %v1277
        %1279 = vmatprep.subr.mxu0 0.0
        %1280 = vmatpush1.msra.mxu0 0.0
        %1281 = vmatprep.subr.mxu0 0.0
        %1282 = vmatpush1.msra.mxu0 0.0
        %1283 = vmatprep.subr.mxu0 0.0
        %1284 = vmatpush1.msra.mxu0 0.0
        %1285 = vmatprep.subr.mxu0 0.0
        %1286 = vmatpush1.msra.mxu0 0.0
        %1287 = vmatprep.subr.mxu0 0.0
        %1288 = vmatpush1.msra.mxu0 0.0
        %1289 = vmatprep.subr.mxu0 0.0
        %1290 = vmatpush1.msra.mxu0 0.0
        %1291 = vmatprep.subr.mxu0 0.0
        %1292 = vmatpush1.msra.mxu0 0.0
        %1293 = vmatprep.subr.mxu0 0.0
        %1294 = vmatpush1.msra.mxu0 0.0
        %1295 = vmatprep.subr.mxu0 0.0
        %1296 = vmatpush1.msra.mxu0 0.0
        %1297 = vmatprep.subr.mxu0 0.0
        %1298 = vmatpush1.msra.mxu0 0.0
        %1299 = vmatprep.subr.mxu0 0.0
        %1300 = vmatpush1.msra.mxu0 0.0
        %1301 = vmatprep.subr.mxu0 0.0
        %1302 = vmatpush1.msra.mxu0 0.0
        %1303 = vmatprep.subr.mxu0 0.0
        %1304 = vmatpush1.msra.mxu0 0.0
        %1305 = vmatprep.subr.mxu0 0.0
        %1306 = vmatpush1.msra.mxu0 0.0
        %1307 = vmatprep.subr.mxu0 0.0
        %1308 = vmatpush1.msra.mxu0 0.0
        %1309 = vmatprep.subr.mxu0 0.0
        %1310 = vmatpush1.msra.mxu0 0.0
        %1311 = vmatprep.subr.mxu0 0.0
        %1312 = vmatpush1.msra.mxu0 0.0
        %1313 = vmatprep.subr.mxu0 0.0
        %1314 = vmatpush1.msra.mxu0 0.0
        %1315 = vmatprep.subr.mxu0 0.0
        %1316 = vmatpush1.msra.mxu0 0.0
        %1317 = vmatprep.subr.mxu0 0.0
        %1318 = vmatpush1.msra.mxu0 0.0
        %1319 = vmatprep.subr.mxu0 0.0
        %1320 = vmatpush1.msra.mxu0 0.0
        %1321 = vmatprep.subr.mxu0 0.0
        %1322 = vmatpush1.msra.mxu0 0.0
        %1323 = vmatprep.subr.mxu0 0.0
        %1324 = vmatpush1.msra.mxu0 0.0
        %1325 = vmatprep.subr.mxu0 0.0
        %1326 = vmatpush1.msra.mxu0 0.0
        %1327 = vmatprep.subr.mxu0 0.0
        %1328 = vmatpush1.msra.mxu0 0.0
        %1329 = vmatprep.subr.mxu0 0.0
        %1330 = vmatpush1.msra.mxu0 0.0
        %1331 = vmatprep.subr.mxu0 0.0
        %1332 = vmatpush1.msra.mxu0 0.0
        %1333 = vmatprep.subr.mxu0 0.0
        %1334 = vmatpush1.msra.mxu0 0.0
        %1335 = vmatprep.mubr.f32.mxu0 0.0
        %v1336 = vand.u32 %v666, 4294901760
        %v1337 = vsub.f32 %v666, %v1336
        %v1338 = vand.u32 %v1337, 4294901760
        %v1339 = vsub.f32 %v1337, %v1338
        %v1340 = vand.u32 %v1339, 4294901760
        %1341 = vmatmul.mubr.f32.gmra.mrb[0].mxu0 %v1340
        %v1342 = vpop.f32.mrb[0].mxu0
        %v1343 = vadd.f32 0.0, %v1342
        %v1344 = vpop.f32.mrb[0].mxu0
        %v1345 = vadd.f32 0.0, %v1344
        %1346 = vmatprep.mubr.f32.mxu0 0.0
        %v1347 = vand.u32 %v669, 4294901760
        %v1348 = vsub.f32 %v669, %v1347
        %v1349 = vand.u32 %v1348, 4294901760
        %v1350 = vsub.f32 %v1348, %v1349
        %v1351 = vand.u32 %v1350, 4294901760
        %1352 = vmatmul.mubr.f32.gmra.mrb[0].mxu0 %v1351
        %v1353 = vpop.f32.mrb[0].mxu0
        %v1354 = vadd.f32 0.0, %v1353
        %v1355 = vpop.f32.mrb[0].mxu0
        %v1356 = vadd.f32 0.0, %v1355
        %1357 = vdwg.mxu0
        %v1358 = vand.u32 %v619, 4294901760
        %v1359 = vsub.f32 %v619, %v1358
        %v1360 = vand.u32 %v1359, 4294901760
        %v1361 = vsub.f32 %v1359, %v1360
        %v1362 = vand.u32 %v1361, 4294901760
        %1363 = vmatprep.subr.mxu0 %v1362
        %v1364 = vand.u32 %v618, 4294901760
        %v1365 = vsub.f32 %v618, %v1364
        %v1366 = vand.u32 %v1365, 4294901760
        %v1367 = vsub.f32 %v1365, %v1366
        %v1368 = vand.u32 %v1367, 4294901760
        %1369 = vmatpush1.msra.mxu0 %v1368
        %v1370 = vand.u32 %v623, 4294901760
        %v1371 = vsub.f32 %v623, %v1370
        %v1372 = vand.u32 %v1371, 4294901760
        %v1373 = vsub.f32 %v1371, %v1372
        %v1374 = vand.u32 %v1373, 4294901760
        %1375 = vmatprep.subr.mxu0 %v1374
        %v1376 = vand.u32 %v622, 4294901760
        %v1377 = vsub.f32 %v622, %v1376
        %v1378 = vand.u32 %v1377, 4294901760
        %v1379 = vsub.f32 %v1377, %v1378
        %v1380 = vand.u32 %v1379, 4294901760
        %1381 = vmatpush1.msra.mxu0 %v1380
        %v1382 = vand.u32 %v627, 4294901760
        %v1383 = vsub.f32 %v627, %v1382
        %v1384 = vand.u32 %v1383, 4294901760
        %v1385 = vsub.f32 %v1383, %v1384
        %v1386 = vand.u32 %v1385, 4294901760
        %1387 = vmatprep.subr.mxu0 %v1386
        %v1388 = vand.u32 %v626, 4294901760
        %v1389 = vsub.f32 %v626, %v1388
        %v1390 = vand.u32 %v1389, 4294901760
        %v1391 = vsub.f32 %v1389, %v1390
        %v1392 = vand.u32 %v1391, 4294901760
        %1393 = vmatpush1.msra.mxu0 %v1392
        %v1394 = vand.u32 %v631, 4294901760
        %v1395 = vsub.f32 %v631, %v1394
        %v1396 = vand.u32 %v1395, 4294901760
        %v1397 = vsub.f32 %v1395, %v1396
        %v1398 = vand.u32 %v1397, 4294901760
        %1399 = vmatprep.subr.mxu0 %v1398
        %v1400 = vand.u32 %v630, 4294901760
        %v1401 = vsub.f32 %v630, %v1400
        %v1402 = vand.u32 %v1401, 4294901760
        %v1403 = vsub.f32 %v1401, %v1402
        %v1404 = vand.u32 %v1403, 4294901760
        %1405 = vmatpush1.msra.mxu0 %v1404
        %1406 = vmatprep.subr.mxu0 0.0
        %1407 = vmatpush1.msra.mxu0 0.0
        %1408 = vmatprep.subr.mxu0 0.0
        %1409 = vmatpush1.msra.mxu0 0.0
        %1410 = vmatprep.subr.mxu0 0.0
        %1411 = vmatpush1.msra.mxu0 0.0
        %1412 = vmatprep.subr.mxu0 0.0
        %1413 = vmatpush1.msra.mxu0 0.0
        %1414 = vmatprep.subr.mxu0 0.0
        %1415 = vmatpush1.msra.mxu0 0.0
        %1416 = vmatprep.subr.mxu0 0.0
        %1417 = vmatpush1.msra.mxu0 0.0
        %1418 = vmatprep.subr.mxu0 0.0
        %1419 = vmatpush1.msra.mxu0 0.0
        %1420 = vmatprep.subr.mxu0 0.0
        %1421 = vmatpush1.msra.mxu0 0.0
        %1422 = vmatprep.subr.mxu0 0.0
        %1423 = vmatpush1.msra.mxu0 0.0
        %1424 = vmatprep.subr.mxu0 0.0
        %1425 = vmatpush1.msra.mxu0 0.0
        %1426 = vmatprep.subr.mxu0 0.0
        %1427 = vmatpush1.msra.mxu0 0.0
        %1428 = vmatprep.subr.mxu0 0.0
        %1429 = vmatpush1.msra.mxu0 0.0
        %1430 = vmatprep.subr.mxu0 0.0
        %1431 = vmatpush1.msra.mxu0 0.0
        %1432 = vmatprep.subr.mxu0 0.0
        %1433 = vmatpush1.msra.mxu0 0.0
        %1434 = vmatprep.subr.mxu0 0.0
        %1435 = vmatpush1.msra.mxu0 0.0
        %1436 = vmatprep.subr.mxu0 0.0
        %1437 = vmatpush1.msra.mxu0 0.0
        %1438 = vmatprep.subr.mxu0 0.0
        %1439 = vmatpush1.msra.mxu0 0.0
        %1440 = vmatprep.subr.mxu0 0.0
        %1441 = vmatpush1.msra.mxu0 0.0
        %1442 = vmatprep.subr.mxu0 0.0
        %1443 = vmatpush1.msra.mxu0 0.0
        %1444 = vmatprep.subr.mxu0 0.0
        %1445 = vmatpush1.msra.mxu0 0.0
        %1446 = vmatprep.subr.mxu0 0.0
        %1447 = vmatpush1.msra.mxu0 0.0
        %1448 = vmatprep.subr.mxu0 0.0
        %1449 = vmatpush1.msra.mxu0 0.0
        %1450 = vmatprep.subr.mxu0 0.0
        %1451 = vmatpush1.msra.mxu0 0.0
        %1452 = vmatprep.subr.mxu0 0.0
        %1453 = vmatpush1.msra.mxu0 0.0
        %1454 = vmatprep.subr.mxu0 0.0
        %1455 = vmatpush1.msra.mxu0 0.0
        %1456 = vmatprep.subr.mxu0 0.0
        %1457 = vmatpush1.msra.mxu0 0.0
        %1458 = vmatprep.subr.mxu0 0.0
        %1459 = vmatpush1.msra.mxu0 0.0
        %1460 = vmatprep.subr.mxu0 0.0
        %1461 = vmatpush1.msra.mxu0 0.0
        %1462 = vmatprep.mubr.f32.mxu0 0.0
        %v1463 = vand.u32 %v666, 4294901760
        %1464 = vmatmul.mubr.f32.gmra.mrb[0].mxu0 %v1463
        %v1465 = vpop.f32.mrb[0].mxu0
        %v1466 = vadd.f32 %v1343, %v1465
        %v1467 = vpop.f32.mrb[0].mxu0
        %v1468 = vadd.f32 %v1345, %v1467
        %1469 = vmatprep.mubr.f32.mxu0 0.0
        %v1470 = vand.u32 %v669, 4294901760
        %1471 = vmatmul.mubr.f32.gmra.mrb[0].mxu0 %v1470
        %v1472 = vpop.f32.mrb[0].mxu0
        %v1473 = vadd.f32 %v1354, %v1472
        %v1474 = vpop.f32.mrb[0].mxu0
        %v1475 = vadd.f32 %v1356, %v1474
        %1476 = vdwg.mxu0
        %v1477 = vand.u32 %v619, 4294901760
        %v1478 = vsub.f32 %v619, %v1477
        %1479 = vmatprep.subr.mxu0 %v1478
        %v1480 = vand.u32 %v618, 4294901760
        %v1481 = vsub.f32 %v618, %v1480
        %1482 = vmatpush1.msra.mxu0 %v1481
        %v1483 = vand.u32 %v623, 4294901760
        %v1484 = vsub.f32 %v623, %v1483
        %1485 = vmatprep.subr.mxu0 %v1484
        %v1486 = vand.u32 %v622, 4294901760
        %v1487 = vsub.f32 %v622, %v1486
        %1488 = vmatpush1.msra.mxu0 %v1487
        %v1489 = vand.u32 %v627, 4294901760
        %v1490 = vsub.f32 %v627, %v1489
        %1491 = vmatprep.subr.mxu0 %v1490
        %v1492 = vand.u32 %v626, 4294901760
        %v1493 = vsub.f32 %v626, %v1492
        %1494 = vmatpush1.msra.mxu0 %v1493
        %v1495 = vand.u32 %v631, 4294901760
        %v1496 = vsub.f32 %v631, %v1495
        %1497 = vmatprep.subr.mxu0 %v1496
        %v1498 = vand.u32 %v630, 4294901760
        %v1499 = vsub.f32 %v630, %v1498
        %1500 = vmatpush1.msra.mxu0 %v1499
        %1501 = vmatprep.subr.mxu0 0.0
        %1502 = vmatpush1.msra.mxu0 0.0
        %1503 = vmatprep.subr.mxu0 0.0
        %1504 = vmatpush1.msra.mxu0 0.0
        %1505 = vmatprep.subr.mxu0 0.0
        %1506 = vmatpush1.msra.mxu0 0.0
        %1507 = vmatprep.subr.mxu0 0.0
        %1508 = vmatpush1.msra.mxu0 0.0
        %1509 = vmatprep.subr.mxu0 0.0
        %1510 = vmatpush1.msra.mxu0 0.0
        %1511 = vmatprep.subr.mxu0 0.0
        %1512 = vmatpush1.msra.mxu0 0.0
        %1513 = vmatprep.subr.mxu0 0.0
        %1514 = vmatpush1.msra.mxu0 0.0
        %1515 = vmatprep.subr.mxu0 0.0
        %1516 = vmatpush1.msra.mxu0 0.0
        %1517 = vmatprep.subr.mxu0 0.0
        %1518 = vmatpush1.msra.mxu0 0.0
        %1519 = vmatprep.subr.mxu0 0.0
        %1520 = vmatpush1.msra.mxu0 0.0
        %1521 = vmatprep.subr.mxu0 0.0
        %1522 = vmatpush1.msra.mxu0 0.0
        %1523 = vmatprep.subr.mxu0 0.0
        %1524 = vmatpush1.msra.mxu0 0.0
        %1525 = vmatprep.subr.mxu0 0.0
        %1526 = vmatpush1.msra.mxu0 0.0
        %1527 = vmatprep.subr.mxu0 0.0
        %1528 = vmatpush1.msra.mxu0 0.0
        %1529 = vmatprep.subr.mxu0 0.0
        %1530 = vmatpush1.msra.mxu0 0.0
        %1531 = vmatprep.subr.mxu0 0.0
        %1532 = vmatpush1.msra.mxu0 0.0
        %1533 = vmatprep.subr.mxu0 0.0
        %1534 = vmatpush1.msra.mxu0 0.0
        %1535 = vmatprep.subr.mxu0 0.0
        %1536 = vmatpush1.msra.mxu0 0.0
        %1537 = vmatprep.subr.mxu0 0.0
        %1538 = vmatpush1.msra.mxu0 0.0
        %1539 = vmatprep.subr.mxu0 0.0
        %1540 = vmatpush1.msra.mxu0 0.0
        %1541 = vmatprep.subr.mxu0 0.0
        %1542 = vmatpush1.msra.mxu0 0.0
        %1543 = vmatprep.subr.mxu0 0.0
        %1544 = vmatpush1.msra.mxu0 0.0
        %1545 = vmatprep.subr.mxu0 0.0
        %1546 = vmatpush1.msra.mxu0 0.0
        %1547 = vmatprep.subr.mxu0 0.0
        %1548 = vmatpush1.msra.mxu0 0.0
        %1549 = vmatprep.subr.mxu0 0.0
        %1550 = vmatpush1.msra.mxu0 0.0
        %1551 = vmatprep.subr.mxu0 0.0
        %1552 = vmatpush1.msra.mxu0 0.0
        %1553 = vmatprep.subr.mxu0 0.0
        %1554 = vmatpush1.msra.mxu0 0.0
        %1555 = vmatprep.subr.mxu0 0.0
        %1556 = vmatpush1.msra.mxu0 0.0
        %1557 = vmatprep.mubr.f32.mxu0 0.0
        %v1558 = vand.u32 %v666, 4294901760
        %v1559 = vsub.f32 %v666, %v1558
        %1560 = vmatmul.mubr.f32.gmra.mrb[0].mxu0 %v1559
        %v1561 = vpop.f32.mrb[0].mxu0
        %v1562 = vadd.f32 %v1466, %v1561
        %v1563 = vpop.f32.mrb[0].mxu0
        %v1564 = vadd.f32 %v1468, %v1563
        %1565 = vmatprep.mubr.f32.mxu0 0.0
        %v1566 = vand.u32 %v669, 4294901760
        %v1567 = vsub.f32 %v669, %v1566
        %1568 = vmatmul.mubr.f32.gmra.mrb[0].mxu0 %v1567
        %v1569 = vpop.f32.mrb[0].mxu0
        %v1570 = vadd.f32 %v1473, %v1569
        %v1571 = vpop.f32.mrb[0].mxu0
        %v1572 = vadd.f32 %v1475, %v1571
        %1573 = vdwg.mxu0
        %v1574 = vand.u32 %v619, 4294901760
        %1575 = vmatprep.subr.mxu0 %v1574
        %v1576 = vand.u32 %v618, 4294901760
        %1577 = vmatpush1.msra.mxu0 %v1576
        %v1578 = vand.u32 %v623, 4294901760
        %1579 = vmatprep.subr.mxu0 %v1578
        %v1580 = vand.u32 %v622, 4294901760
        %1581 = vmatpush1.msra.mxu0 %v1580
        %v1582 = vand.u32 %v627, 4294901760
        %1583 = vmatprep.subr.mxu0 %v1582
        %v1584 = vand.u32 %v626, 4294901760
        %1585 = vmatpush1.msra.mxu0 %v1584
        %v1586 = vand.u32 %v631, 4294901760
        %1587 = vmatprep.subr.mxu0 %v1586
        %v1588 = vand.u32 %v630, 4294901760
        %1589 = vmatpush1.msra.mxu0 %v1588
        %1590 = vmatprep.subr.mxu0 0.0
        %1591 = vmatpush1.msra.mxu0 0.0
        %1592 = vmatprep.subr.mxu0 0.0
        %1593 = vmatpush1.msra.mxu0 0.0
        %1594 = vmatprep.subr.mxu0 0.0
        %1595 = vmatpush1.msra.mxu0 0.0
        %1596 = vmatprep.subr.mxu0 0.0
        %1597 = vmatpush1.msra.mxu0 0.0
        %1598 = vmatprep.subr.mxu0 0.0
        %1599 = vmatpush1.msra.mxu0 0.0
        %1600 = vmatprep.subr.mxu0 0.0
        %1601 = vmatpush1.msra.mxu0 0.0
        %1602 = vmatprep.subr.mxu0 0.0
        %1603 = vmatpush1.msra.mxu0 0.0
        %1604 = vmatprep.subr.mxu0 0.0
        %1605 = vmatpush1.msra.mxu0 0.0
        %1606 = vmatprep.subr.mxu0 0.0
        %1607 = vmatpush1.msra.mxu0 0.0
        %1608 = vmatprep.subr.mxu0 0.0
        %1609 = vmatpush1.msra.mxu0 0.0
        %1610 = vmatprep.subr.mxu0 0.0
        %1611 = vmatpush1.msra.mxu0 0.0
        %1612 = vmatprep.subr.mxu0 0.0
        %1613 = vmatpush1.msra.mxu0 0.0
        %1614 = vmatprep.subr.mxu0 0.0
        %1615 = vmatpush1.msra.mxu0 0.0
        %1616 = vmatprep.subr.mxu0 0.0
        %1617 = vmatpush1.msra.mxu0 0.0
        %1618 = vmatprep.subr.mxu0 0.0
        %1619 = vmatpush1.msra.mxu0 0.0
        %1620 = vmatprep.subr.mxu0 0.0
        %1621 = vmatpush1.msra.mxu0 0.0
        %1622 = vmatprep.subr.mxu0 0.0
        %1623 = vmatpush1.msra.mxu0 0.0
        %1624 = vmatprep.subr.mxu0 0.0
        %1625 = vmatpush1.msra.mxu0 0.0
        %1626 = vmatprep.subr.mxu0 0.0
        %1627 = vmatpush1.msra.mxu0 0.0
        %1628 = vmatprep.subr.mxu0 0.0
        %1629 = vmatpush1.msra.mxu0 0.0
        %1630 = vmatprep.subr.mxu0 0.0
        %1631 = vmatpush1.msra.mxu0 0.0
        %1632 = vmatprep.subr.mxu0 0.0
        %1633 = vmatpush1.msra.mxu0 0.0
        %1634 = vmatprep.subr.mxu0 0.0
        %1635 = vmatpush1.msra.mxu0 0.0
        %1636 = vmatprep.subr.mxu0 0.0
        %1637 = vmatpush1.msra.mxu0 0.0
        %1638 = vmatprep.subr.mxu0 0.0
        %1639 = vmatpush1.msra.mxu0 0.0
        %1640 = vmatprep.subr.mxu0 0.0
        %1641 = vmatpush1.msra.mxu0 0.0
        %1642 = vmatprep.subr.mxu0 0.0
        %1643 = vmatpush1.msra.mxu0 0.0
        %1644 = vmatprep.subr.mxu0 0.0
        %1645 = vmatpush1.msra.mxu0 0.0
        %1646 = vmatprep.mubr.f32.mxu0 0.0
        %v1647 = vand.u32 %v666, 4294901760
        %v1648 = vsub.f32 %v666, %v1647
        %v1649 = vand.u32 %v1648, 4294901760
        %1650 = vmatmul.mubr.f32.gmra.mrb[0].mxu0 %v1649
        %v1651 = vpop.f32.mrb[0].mxu0
        %v1652 = vadd.f32 %v1562, %v1651
        %v1653 = vpop.f32.mrb[0].mxu0
        %v1654 = vadd.f32 %v1564, %v1653
        %1655 = vmatprep.mubr.f32.mxu0 0.0
        %v1656 = vand.u32 %v669, 4294901760
        %v1657 = vsub.f32 %v669, %v1656
        %v1658 = vand.u32 %v1657, 4294901760
        %1659 = vmatmul.mubr.f32.gmra.mrb[0].mxu0 %v1658
        %v1660 = vpop.f32.mrb[0].mxu0
        %v1661 = vadd.f32 %v1570, %v1660
        %v1662 = vpop.f32.mrb[0].mxu0
        %v1663 = vadd.f32 %v1572, %v1662
        %1664 = vdwg.mxu0
        %v1665 = vand.u32 %v619, 4294901760
        %v1666 = vsub.f32 %v619, %v1665
        %v1667 = vand.u32 %v1666, 4294901760
        %1668 = vmatprep.subr.mxu0 %v1667
        %v1669 = vand.u32 %v618, 4294901760
        %v1670 = vsub.f32 %v618, %v1669
        %v1671 = vand.u32 %v1670, 4294901760
        %1672 = vmatpush1.msra.mxu0 %v1671
        %v1673 = vand.u32 %v623, 4294901760
        %v1674 = vsub.f32 %v623, %v1673
        %v1675 = vand.u32 %v1674, 4294901760
        %1676 = vmatprep.subr.mxu0 %v1675
        %v1677 = vand.u32 %v622, 4294901760
        %v1678 = vsub.f32 %v622, %v1677
        %v1679 = vand.u32 %v1678, 4294901760
        %1680 = vmatpush1.msra.mxu0 %v1679
        %v1681 = vand.u32 %v627, 4294901760
        %v1682 = vsub.f32 %v627, %v1681
        %v1683 = vand.u32 %v1682, 4294901760
        %1684 = vmatprep.subr.mxu0 %v1683
        %v1685 = vand.u32 %v626, 4294901760
        %v1686 = vsub.f32 %v626, %v1685
        %v1687 = vand.u32 %v1686, 4294901760
        %1688 = vmatpush1.msra.mxu0 %v1687
        %v1689 = vand.u32 %v631, 4294901760
        %v1690 = vsub.f32 %v631, %v1689
        %v1691 = vand.u32 %v1690, 4294901760
        %1692 = vmatprep.subr.mxu0 %v1691
        %v1693 = vand.u32 %v630, 4294901760
        %v1694 = vsub.f32 %v630, %v1693
        %v1695 = vand.u32 %v1694, 4294901760
        %1696 = vmatpush1.msra.mxu0 %v1695
        %1697 = vmatprep.subr.mxu0 0.0
        %1698 = vmatpush1.msra.mxu0 0.0
        %1699 = vmatprep.subr.mxu0 0.0
        %1700 = vmatpush1.msra.mxu0 0.0
        %1701 = vmatprep.subr.mxu0 0.0
        %1702 = vmatpush1.msra.mxu0 0.0
        %1703 = vmatprep.subr.mxu0 0.0
        %1704 = vmatpush1.msra.mxu0 0.0
        %1705 = vmatprep.subr.mxu0 0.0
        %1706 = vmatpush1.msra.mxu0 0.0
        %1707 = vmatprep.subr.mxu0 0.0
        %1708 = vmatpush1.msra.mxu0 0.0
        %1709 = vmatprep.subr.mxu0 0.0
        %1710 = vmatpush1.msra.mxu0 0.0
        %1711 = vmatprep.subr.mxu0 0.0
        %1712 = vmatpush1.msra.mxu0 0.0
        %1713 = vmatprep.subr.mxu0 0.0
        %1714 = vmatpush1.msra.mxu0 0.0
        %1715 = vmatprep.subr.mxu0 0.0
        %1716 = vmatpush1.msra.mxu0 0.0
        %1717 = vmatprep.subr.mxu0 0.0
        %1718 = vmatpush1.msra.mxu0 0.0
        %1719 = vmatprep.subr.mxu0 0.0
        %1720 = vmatpush1.msra.mxu0 0.0
        %1721 = vmatprep.subr.mxu0 0.0
        %1722 = vmatpush1.msra.mxu0 0.0
        %1723 = vmatprep.subr.mxu0 0.0
        %1724 = vmatpush1.msra.mxu0 0.0
        %1725 = vmatprep.subr.mxu0 0.0
        %1726 = vmatpush1.msra.mxu0 0.0
        %1727 = vmatprep.subr.mxu0 0.0
        %1728 = vmatpush1.msra.mxu0 0.0
        %1729 = vmatprep.subr.mxu0 0.0
        %1730 = vmatpush1.msra.mxu0 0.0
        %1731 = vmatprep.subr.mxu0 0.0
        %1732 = vmatpush1.msra.mxu0 0.0
        %1733 = vmatprep.subr.mxu0 0.0
        %1734 = vmatpush1.msra.mxu0 0.0
        %1735 = vmatprep.subr.mxu0 0.0
        %1736 = vmatpush1.msra.mxu0 0.0
        %1737 = vmatprep.subr.mxu0 0.0
        %1738 = vmatpush1.msra.mxu0 0.0
        %1739 = vmatprep.subr.mxu0 0.0
        %1740 = vmatpush1.msra.mxu0 0.0
        %1741 = vmatprep.subr.mxu0 0.0
        %1742 = vmatpush1.msra.mxu0 0.0
        %1743 = vmatprep.subr.mxu0 0.0
        %1744 = vmatpush1.msra.mxu0 0.0
        %1745 = vmatprep.subr.mxu0 0.0
        %1746 = vmatpush1.msra.mxu0 0.0
        %1747 = vmatprep.subr.mxu0 0.0
        %1748 = vmatpush1.msra.mxu0 0.0
        %1749 = vmatprep.subr.mxu0 0.0
        %1750 = vmatpush1.msra.mxu0 0.0
        %1751 = vmatprep.subr.mxu0 0.0
        %1752 = vmatpush1.msra.mxu0 0.0
        %1753 = vmatprep.mubr.f32.mxu0 0.0
        %v1754 = vand.u32 %v666, 4294901760
        %1755 = vmatmul.mubr.f32.gmra.mrb[0].mxu0 %v1754
        %v1756 = vpop.f32.mrb[0].mxu0
        %v1757 = vadd.f32 %v1652, %v1756
        %v1758 = vpop.f32.mrb[0].mxu0
        %v1759 = vadd.f32 %v1654, %v1758
        %1760 = vmatprep.mubr.f32.mxu0 0.0
        %v1761 = vand.u32 %v669, 4294901760
        %1762 = vmatmul.mubr.f32.gmra.mrb[0].mxu0 %v1761
        %v1763 = vpop.f32.mrb[0].mxu0
        %v1764 = vadd.f32 %v1661, %v1763
        %v1765 = vpop.f32.mrb[0].mxu0
        %v1766 = vadd.f32 %v1663, %v1765
        %1767 = vdwg.mxu0
        %v1768 = vand.u32 %v619, 4294901760
        %1769 = vmatprep.subr.mxu0 %v1768
        %v1770 = vand.u32 %v618, 4294901760
        %1771 = vmatpush1.msra.mxu0 %v1770
        %v1772 = vand.u32 %v623, 4294901760
        %1773 = vmatprep.subr.mxu0 %v1772
        %v1774 = vand.u32 %v622, 4294901760
        %1775 = vmatpush1.msra.mxu0 %v1774
        %v1776 = vand.u32 %v627, 4294901760
        %1777 = vmatprep.subr.mxu0 %v1776
        %v1778 = vand.u32 %v626, 4294901760
        %1779 = vmatpush1.msra.mxu0 %v1778
        %v1780 = vand.u32 %v631, 4294901760
        %1781 = vmatprep.subr.mxu0 %v1780
        %v1782 = vand.u32 %v630, 4294901760
        %1783 = vmatpush1.msra.mxu0 %v1782
        %1784 = vmatprep.subr.mxu0 0.0
        %1785 = vmatpush1.msra.mxu0 0.0
        %1786 = vmatprep.subr.mxu0 0.0
        %1787 = vmatpush1.msra.mxu0 0.0
        %1788 = vmatprep.subr.mxu0 0.0
        %1789 = vmatpush1.msra.mxu0 0.0
        %1790 = vmatprep.subr.mxu0 0.0
        %1791 = vmatpush1.msra.mxu0 0.0
        %1792 = vmatprep.subr.mxu0 0.0
        %1793 = vmatpush1.msra.mxu0 0.0
        %1794 = vmatprep.subr.mxu0 0.0
        %1795 = vmatpush1.msra.mxu0 0.0
        %1796 = vmatprep.subr.mxu0 0.0
        %1797 = vmatpush1.msra.mxu0 0.0
        %1798 = vmatprep.subr.mxu0 0.0
        %1799 = vmatpush1.msra.mxu0 0.0
        %1800 = vmatprep.subr.mxu0 0.0
        %1801 = vmatpush1.msra.mxu0 0.0
        %1802 = vmatprep.subr.mxu0 0.0
        %1803 = vmatpush1.msra.mxu0 0.0
        %1804 = vmatprep.subr.mxu0 0.0
        %1805 = vmatpush1.msra.mxu0 0.0
        %1806 = vmatprep.subr.mxu0 0.0
        %1807 = vmatpush1.msra.mxu0 0.0
        %1808 = vmatprep.subr.mxu0 0.0
        %1809 = vmatpush1.msra.mxu0 0.0
        %1810 = vmatprep.subr.mxu0 0.0
        %1811 = vmatpush1.msra.mxu0 0.0
        %1812 = vmatprep.subr.mxu0 0.0
        %1813 = vmatpush1.msra.mxu0 0.0
        %1814 = vmatprep.subr.mxu0 0.0
        %1815 = vmatpush1.msra.mxu0 0.0
        %1816 = vmatprep.subr.mxu0 0.0
        %1817 = vmatpush1.msra.mxu0 0.0
        %1818 = vmatprep.subr.mxu0 0.0
        %1819 = vmatpush1.msra.mxu0 0.0
        %1820 = vmatprep.subr.mxu0 0.0
        %1821 = vmatpush1.msra.mxu0 0.0
        %1822 = vmatprep.subr.mxu0 0.0
        %1823 = vmatpush1.msra.mxu0 0.0
        %1824 = vmatprep.subr.mxu0 0.0
        %1825 = vmatpush1.msra.mxu0 0.0
        %1826 = vmatprep.subr.mxu0 0.0
        %1827 = vmatpush1.msra.mxu0 0.0
        %1828 = vmatprep.subr.mxu0 0.0
        %1829 = vmatpush1.msra.mxu0 0.0
        %1830 = vmatprep.subr.mxu0 0.0
        %1831 = vmatpush1.msra.mxu0 0.0
        %1832 = vmatprep.subr.mxu0 0.0
        %1833 = vmatpush1.msra.mxu0 0.0
        %1834 = vmatprep.subr.mxu0 0.0
        %1835 = vmatpush1.msra.mxu0 0.0
        %1836 = vmatprep.subr.mxu0 0.0
        %1837 = vmatpush1.msra.mxu0 0.0
        %1838 = vmatprep.subr.mxu0 0.0
        %1839 = vmatpush1.msra.mxu0 0.0
        %1840 = vmatprep.mubr.f32.mxu0 0.0
        %v1841 = vand.u32 %v666, 4294901760
        %1842 = vmatmul.mubr.f32.gmra.mrb[0].mxu0 %v1841
        %v1843 = vpop.f32.mrb[0].mxu0
        %v1844 = vadd.f32 %v1757, %v1843
        %v1845 = vpop.f32.mrb[0].mxu0
        %v1846 = vadd.f32 %v1759, %v1845
        %1847 = vmatprep.mubr.f32.mxu0 0.0
        %v1848 = vand.u32 %v669, 4294901760
        %1849 = vmatmul.mubr.f32.gmra.mrb[0].mxu0 %v1848
        %v1850 = vpop.f32.mrb[0].mxu0
        %v1851 = vadd.f32 %v1764, %v1850
        %v1852 = vpop.f32.mrb[0].mxu0
        %v1853 = vadd.f32 %v1766, %v1852
        %1854 = vdwg.mxu0
        %s1855 = smul.u32 %s21, 512
        %s1856 = sadd.s32 %s1855, 0
        %v1857 = vstv %s1856
        %v1858 = vadd.s32 %v1857, %v607
        %v1859 = vadd.s32 %v1857, %v608
        %v1860 = vadd.s32 %v1857, %v609
        %v1861 = vadd.s32 %v1857, %v610
        %vm1862 = vcmp.lt.s32.totalorder %v1858, 8
        %vm1863 = vcmp.lt.s32.totalorder %v1859, 8
        %vm1864 = vcmp.lt.s32.totalorder %v1860, 8
        %vm1865 = vcmp.lt.s32.totalorder %v1861, 8
        %v1866 = vsel %vm1862, %v1252, 0.0
        %v1867 = vsel %vm1863, %v1254, 0.0
        %v1868 = vsel %vm1864, %v1844, 0.0
        %v1869 = vsel %vm1865, %v1846, 0.0
        %v1870 = vsel %vm1862, %v1259, 0.0
        %v1871 = vsel %vm1863, %v1261, 0.0
        %v1872 = vsel %vm1864, %v1851, 0.0
        %v1873 = vsel %vm1865, %v1853, 0.0
        %v1874 = vld [vmem:[#allocation2] sm:$0xff]
        %v1875 = vadd.f32 %v1866, %v1874
        %v1876 = vadd.f32 %v1867, 0.0
        %v1877 = vadd.f32 %v1868, 0.0
        %v1878 = vadd.f32 %v1869, 0.0
        %1883 = vrot.lane.b32.xlu0 %v1870, 1
        %v1884 = vpop.permute.xlu0 %1883
        %1885 = vrot.lane.b32.xlu0 %v1871, 1
        %v1886 = vpop.permute.xlu0 %1885
        %1887 = vrot.lane.b32.xlu0 %v1872, 1
        %v1888 = vpop.permute.xlu0 %1887
        %1889 = vrot.lane.b32.xlu0 %v1873, 1
        %v1890 = vpop.permute.xlu0 %1889
        %vm1891 = vcmask 7168
        %v1892 = vsel %vm1891, %v1884, %v1886
        %v1893 = vsel %vm1891, %v1886, %v1888
        %v1894 = vsel %vm1891, %v1888, %v1890
        %v1899 = vsel %vm1891, 0.0, %v1884
        %v1900 = vadd.f32 %v1875, %v1899
        %v1901 = vadd.f32 %v1876, %v1892
        %v1902 = vadd.f32 %v1877, %v1893
        %v1903 = vadd.f32 %v1878, %v1894
        %v1905 = vsel %vm1891, %v1890, 0.0
        %v1906 = vadd.f32 %v1905, 0.0
        %1907 = vst [vmem:[#allocation2] sm:$0xff] %v1906
        %1908 = vst [vmem:[%s596] sm:$0xff] %v1900
        %1909 = vst [vmem:[%s596 + $0x8] sm:$0xff] %v1901
        %1910 = vst [vmem:[%s596 + $0x10] sm:$0xff] %v1902
        %1911 = vst [vmem:[%s596 + $0x18] sm:$0xff] %v1903
        %s1912 = sand.u32 %s91, 1
        %s1913 = scalar_lea.sflag [#allocation5], %s1912
        %s1914 = sand.u32 %s91, 1
        %s1915 = smul.addr %s1914, 32
        %s1916 = scalar_lea.vmem [#allocation4], %s1915
        // Predicated region
        $region99: #{tpu_custom_call.1} parent=89 // pred_check
          %p1917 = pneg %p101
        $region100: #{tpu_custom_call.1} parent=89 // pred_check_branch
          %1919 = sbr.rel (%p1917) target = $region102
        $region101: #{tpu_custom_call.1} parent=89 // pred_region
          %s1921 = ssub.s32 512, 512
          %1922 = vsyncadd %s1913, %s1921
          %s1923 = smul.addr %s21, 4
          %s1924 = smul.addr %s20, 4
          %s1925 = sadd.s32 %s1923, %s1924
          %s1926 = smul.addr %s1925, 128
          %s1927 = scalar_lea.hbm %s2, %s1926
          %s1929 = sshll.u32 %s1916, 4
          %s1930 = int_to_ptr.vmem [resolvable:$true] %s1929
          %1932 = dma.vmem_to_hbm [thread:$0]  %s1930, 512, %s1927, %s1913
        $region102: #{tpu_custom_call.1} parent=89 // pred_fallthru
          _
      $region90: #{tpu_custom_call.1} parent=5 // pred_fallthru
        _
      %p1933 = scmp.le.s32.totalorder 2, %s11
      // Predicated region
      $region103: #{tpu_custom_call.1} parent=5 // pred_check
        %p1934 = pneg %p1933
      $region104: #{tpu_custom_call.1} parent=5 // pred_check_branch
        %1936 = sbr.rel (%p1934) target = $region106
      $region105: #{tpu_custom_call.1} parent=5 // pred_region
        %s1937 = ssub.s32 %s11, 2
        // Predicated region
        $region107: #{tpu_custom_call.1} parent=105 // pred_check
          %p1938 = pneg %p107
        $region108: #{tpu_custom_call.1} parent=105 // pred_check_branch
          %1940 = sbr.rel (%p1938) target = $region110
        $region109: #{tpu_custom_call.1} parent=105 // pred_region
          %s1941 = sand.u32 %s92, 1
          %s1942 = scalar_lea.sflag [#allocation5], %s1941
          %s1943 = sand.u32 %s92, 1
          %s1944 = smul.addr %s1943, 32
          %s1945 = scalar_lea.vmem [#allocation4], %s1944
          %1946 = dma.done %s1942, 512
        $region110: #{tpu_custom_call.1} parent=105 // pred_fallthru
          _
      $region106: #{tpu_custom_call.1} parent=5 // pred_fallthru
        _
    $region6: #{tpu_custom_call.1} parent=1 // loop_footer
      %s15 = sadd.s32 1, %s11
    $region7: #{tpu_custom_call.1} parent=1 // loop_footer_branch
      %10 = sbr.rel target = $region3
    $region8: #{tpu_custom_call.1} parent=1 // loop_exit
      _
    %1947 = vsyncpa [#allocation5], 1
    %s1948 = scalar_lea.sflag [#allocation5], 1
    %1949 = vsyncpa %s1948, 1

</llo_original>
